<compile_context>
chip_gen: v7x
topology: tpu7x:2x2x1
jax: 0.10.0
libtpu: 0.0.40
codegen_flags: <defaults>
</compile_context>

<pallas_src>
import math

import jax
import jax.numpy as jnp
from jax.experimental import pallas as pl
from jax.experimental.pallas import tpu as pltpu

EPS = 1e-5          # nn.BatchNorm2d default eps
NEG_SLOPE = 0.01    # nn.LeakyReLU default negative_slope


def _round_up(x, m):
    return (x + m - 1) // m * m


def _make_kernel(N, H, W, C0p, C1p):
    NH = N * H
    inv_cnt = 1.0 / float(N * H * W)
    HIGHEST = jax.lax.Precision.HIGHEST

    def kernel(x_ref, w1_ref, w2_ref, gb1_ref, gb2_ref, g1t_ref, g2t_ref,
               o_ref, st1_ref, sc1_ref, st2_ref, sc2_ref):

        def batchnorm(t, gb_ref, gT_ref, st_ref, sc_ref):
            # Single-pass batch stats; [sum; sumsq] stacked through a tiny VMEM
            # scratch so the reduce and the broadcast are each ONE M=2 dot.
            st_ref[0:1, :] = jnp.sum(t, axis=0, keepdims=True)
            st_ref[1:2, :] = jnp.sum(t * t, axis=0, keepdims=True)
            mq = jax.lax.dot_general(                       # [mean; E[x^2]] (2, C)
                st_ref[...], gT_ref[...], (((1,), (1,)), ((), ())),
                precision=HIGHEST,
                preferred_element_type=jnp.float32) * inv_cnt
            m = mq[0:1, :]
            v = mq[1:2, :] - m * m                          # biased variance
            a = jax.lax.rsqrt(v + EPS) * gb_ref[0:1, :]     # gamma folded in
            sc_ref[0:1, :] = a
            sc_ref[1:2, :] = gb_ref[1:2, :] - m * a
            ssb = jnp.dot(sc_ref[...], gT_ref[...],         # [scale; shift] (2, W*C)
                          precision=HIGHEST,
                          preferred_element_type=jnp.float32)
            return t * ssb[0:1, :] + ssb[1:2, :]

        # ---- conv1: 1x1 conv == one lane-dense matmul (K = W*C1p) -----------
        t = jnp.dot(x_ref[...], w1_ref[...],
                    preferred_element_type=jnp.float32)      # (NH, W*C0p)
        t = batchnorm(t, gb1_ref, g1t_ref, st1_ref, sc1_ref)
        t = jnp.maximum(t, NEG_SLOPE * t)                    # LeakyReLU

        # ---- conv2: 3x3, pad=1, fused into ONE K = 3*W*C0p matmul ------------
        # dw taps & W-boundary zeros live in the banded weight; dh taps are XLU
        # sublane rolls with hoisted per-image-row masks.
        h_idx = jax.lax.broadcasted_iota(jnp.int32, (NH, 1), 0) % H
        up = jnp.where(h_idx > 0, pltpu.roll(t, 1, 0), 0.0)             # t[r-1]
        dn = jnp.where(h_idx < (H - 1), pltpu.roll(t, NH - 1, 0), 0.0)  # t[r+1]
        cat = jnp.concatenate([up, t, dn], axis=1)           # (NH, 3*W*C0p)
        acc = jnp.dot(cat, w2_ref[...],
                      preferred_element_type=jnp.float32)    # (NH, W*C1p)

        # ---- bn2 + LeakyReLU + residual --------------------------------------
        y = batchnorm(acc, gb2_ref, g2t_ref, st2_ref, sc2_ref)
        y = jnp.maximum(y, NEG_SLOPE * y)
        # padded channels carry zero weights/gamma/beta, so they stay exactly 0
        o_ref[...] = (y + x_ref[...]).astype(o_ref.dtype)

    return kernel


def resblock_forward(x_nchw, conv1_w, gamma1, beta1, conv2_w, gamma2, beta2):
    f32 = jnp.float32
    N, C1, H, W = x_nchw.shape
    C0 = conv1_w.shape[0]

    # pad channel counts so W*C is a multiple of 128 (lane-dense tiles)
    cmul = 128 // math.gcd(W, 128)
    C0p = _round_up(C0, cmul)
    C1p = _round_up(C1, cmul)
    NH, WC0, WC1 = N * H, W * C0p, W * C1p

    # ---- parameter packing (plain JAX glue, done once) -----------------------
    # conv1 (1x1) weight, channel-padded, block-diagonal over W:
    #   t_ld = x_ld @ kron(I_W, W1^T)
    w1 = jnp.zeros((C0p, C1p), f32).at[:C0, :C1].set(conv1_w[:, :, 0, 0].astype(f32))
    w1_bd = jnp.kron(jnp.eye(W, dtype=f32), w1.T)                      # (WC1, WC0)

    # conv2 (3x3): fold the dw taps + W zero-padding into a banded block matrix
    # per kh, then stack the three bands along K so the kernel issues a single
    # K = 3*W*C0p matmul against [t[r-1] | t[r] | t[r+1]].
    bands = []
    for kh in range(3):
        band = jnp.zeros((WC0, WC1), f32)
        for kw in range(3):
            tap = jnp.zeros((C0p, C1p), f32).at[:C0, :C1].set(
                conv2_w[:, :, kh, kw].astype(f32).T)
            band = band + jnp.kron(jnp.eye(W, k=1 - kw, dtype=f32), tap)
        bands.append(band)
    w2_cat = jnp.concatenate(bands, axis=0)                            # (3*WC0, WC1)

    # channel -> packed-lane broadcast matrices (reduce dir = transposed dot)
    G1T = jnp.kron(jnp.ones((1, W), f32), jnp.eye(C0p, dtype=f32))     # (C0p, WC0)
    G2T = jnp.kron(jnp.ones((1, W), f32), jnp.eye(C1p, dtype=f32))     # (C1p, WC1)

    # gamma/beta pre-stacked as (2, C); padded channels stay zero
    gb1 = (jnp.zeros((2, C0p), f32)
           .at[0, :C0].set(gamma1.astype(f32))
           .at[1, :C0].set(beta1.astype(f32)))
    gb2 = (jnp.zeros((2, C1p), f32)
           .at[0, :C1].set(gamma2.astype(f32))
           .at[1, :C1].set(beta2.astype(f32)))

    # lane-dense, channel-padded activation layout: (N*H, W*C1p), channels minor
    x_ld = jnp.pad(jnp.transpose(x_nchw, (0, 2, 3, 1)),
                   ((0, 0), (0, 0), (0, 0), (0, C1p - C1))).reshape(NH, WC1)

    kernel = _make_kernel(N, H, W, C0p, C1p)

    def full(shape):
        return pl.BlockSpec(shape, lambda i, _s=shape: (0,) * len(_s))

    out_ld = pl.pallas_call(
        kernel,
        out_shape=jax.ShapeDtypeStruct((NH, WC1), x_nchw.dtype),
        grid_spec=pltpu.PrefetchScalarGridSpec(
            num_scalar_prefetch=0,
            grid=(1,),   # BN needs global batch stats; see TODO(synk) at top.
            in_specs=[
                full((NH, WC1)),          # x, lane-dense + channel-padded
                full((WC1, WC0)),         # conv1 block-diagonal weight
                full((3 * WC0, WC1)),     # conv2 fused banded weight (K = 3*W*C0p)
                full((2, C0p)),           # [gamma1; beta1]
                full((2, C1p)),           # [gamma2; beta2]
                full((C0p, WC0)),         # G1^T (broadcast; reduce via trans dot)
                full((C1p, WC1)),         # G2^T
            ],
            out_specs=full((NH, WC1)),
            scratch_shapes=[
                pltpu.VMEM((2, WC0), jnp.float32),   # BN1 [sum; sumsq]
                pltpu.VMEM((2, C0p), jnp.float32),   # BN1 [scale; shift] per-channel
                pltpu.VMEM((2, WC1), jnp.float32),   # BN2 [sum; sumsq]
                pltpu.VMEM((2, C1p), jnp.float32),   # BN2 [scale; shift] per-channel
            ],
        ),
        compiler_params=pltpu.CompilerParams(
            dimension_semantics=("arbitrary",),
            vmem_limit_bytes=32 * 1024 * 1024),
    )(x_ld, w1_bd, w2_cat, gb1, gb2, G1T, G2T)

    out = out_ld.reshape(N, H, W, C1p)[..., :C1]
    return jnp.transpose(out, (0, 3, 1, 2))


def resblock_ref(x, conv1_w, g1, b1, conv2_w, g2, b2):
    """Pure-JAX reference mirroring the PyTorch forward (train-mode BN)."""
    def bn(y, g, b):
        mu = jnp.mean(y, axis=(0, 2, 3), keepdims=True)
        var = jnp.mean((y - mu) ** 2, axis=(0, 2, 3), keepdims=True)
        return (y - mu) * jax.lax.rsqrt(var + EPS) * g.reshape(1, -1, 1, 1) \
            + b.reshape(1, -1, 1, 1)

    def lrelu(y):
        return jnp.where(y > 0, y, NEG_SLOPE * y)

    dn = ("NCHW", "OIHW", "NCHW")
    out = jax.lax.conv_general_dilated(x, conv1_w, (1, 1), "VALID",
                                       dimension_numbers=dn)
    out = lrelu(bn(out, g1, b1))
    out = jax.lax.conv_general_dilated(out, conv2_w, (1, 1),
                                       ((1, 1), (1, 1)), dimension_numbers=dn)
    out = lrelu(bn(out, g2, b2))
    return out + x


if __name__ == "__main__":
    key = jax.random.PRNGKey(0)
    ks = jax.random.split(key, 7)

    N, H, W = 2, 16, 16
    channel = (8, 4)   # ResBlock(channel): conv1 maps C1->C0, conv2 maps C0->C1
    C0, C1 = channel

    x = jax.random.normal(ks[0], (N, C1, H, W), jnp.float32)
    conv1_w = jax.random.normal(ks[1], (C0, C1, 1, 1), jnp.float32) * 0.2
    conv2_w = jax.random.normal(ks[2], (C1, C0, 3, 3), jnp.float32) * 0.1
    gamma1 = jax.random.uniform(ks[3], (C0,), jnp.float32, 0.5, 1.5)
    beta1 = jax.random.normal(ks[4], (C0,), jnp.float32) * 0.1
    gamma2 = jax.random.uniform(ks[5], (C1,), jnp.float32, 0.5, 1.5)
    beta2 = jax.random.normal(ks[6], (C1,), jnp.float32) * 0.1

    out = resblock_forward(x, conv1_w, gamma1, beta1, conv2_w, gamma2, beta2)
    out = jax.block_until_ready(out)

    ref = resblock_ref(x, conv1_w, gamma1, beta1, conv2_w, gamma2, beta2)
    assert out.shape == x.shape
    max_err = float(jnp.max(jnp.abs(out - ref)))
    assert max_err < 2e-3, f"max abs error {max_err}"
    print("KERNEL_OK")
</pallas_src>

<mosaic_0001>
module attributes {stable_mosaic.version = 11 : i64} {
  func.func @kernel(%arg0: i32, %arg1: memref<32x128xf32, #tpu.memory_space<vmem>>, %arg2: memref<128x128xf32, #tpu.memory_space<vmem>>, %arg3: memref<384x128xf32, #tpu.memory_space<vmem>>, %arg4: memref<2x8xf32, #tpu.memory_space<vmem>>, %arg5: memref<2x8xf32, #tpu.memory_space<vmem>>, %arg6: memref<8x128xf32, #tpu.memory_space<vmem>>, %arg7: memref<8x128xf32, #tpu.memory_space<vmem>>, %arg8: memref<32x128xf32, #tpu.memory_space<vmem>>, %arg9: memref<2x128xf32, #tpu.memory_space<vmem>>, %arg10: memref<2x8xf32, #tpu.memory_space<vmem>>, %arg11: memref<2x128xf32, #tpu.memory_space<vmem>>, %arg12: memref<2x8xf32, #tpu.memory_space<vmem>>) attributes {dimension_semantics = [#tpu.dimension_semantics<arbitrary>], iteration_bounds = array<i64: 1>, scalar_prefetch = 0 : i64, scratch_operands = 4 : i64, tpu.core_type = #tpu.core_type<tc>, window_params = [{pipeline_mode = #tpu.pipeline_mode<synchronous>, transform_indices = @transform_0, window_bounds = array<i64: 32, 128>}, {pipeline_mode = #tpu.pipeline_mode<synchronous>, transform_indices = @transform_1, window_bounds = array<i64: 128, 128>}, {pipeline_mode = #tpu.pipeline_mode<synchronous>, transform_indices = @transform_2, window_bounds = array<i64: 384, 128>}, {pipeline_mode = #tpu.pipeline_mode<synchronous>, transform_indices = @transform_3, window_bounds = array<i64: 2, 8>}, {pipeline_mode = #tpu.pipeline_mode<synchronous>, transform_indices = @transform_4, window_bounds = array<i64: 2, 8>}, {pipeline_mode = #tpu.pipeline_mode<synchronous>, transform_indices = @transform_5, window_bounds = array<i64: 8, 128>}, {pipeline_mode = #tpu.pipeline_mode<synchronous>, transform_indices = @transform_6, window_bounds = array<i64: 8, 128>}, {pipeline_mode = #tpu.pipeline_mode<synchronous>, transform_indices = @transform_7, window_bounds = array<i64: 32, 128>}]} {
    %c0 = arith.constant 0 : index
    %c0_0 = arith.constant 0 : index
    %0 = vector.load %arg1[%c0, %c0_0] : memref<32x128xf32, #tpu.memory_space<vmem>>, vector<32x128xf32>
    %c0_1 = arith.constant 0 : index
    %c0_2 = arith.constant 0 : index
    %1 = vector.load %arg2[%c0_1, %c0_2] : memref<128x128xf32, #tpu.memory_space<vmem>>, vector<128x128xf32>
    %cst = arith.constant dense<0.000000e+00> : vector<32x128xf32>
    %2 = tpu.matmul %0, %1, %cst {dimension_numbers = #tpu.dot_dimension_numbers<[1], [0], [0], [1], [0, 0, 1, 1], [], []>} : vector<32x128xf32>, vector<128x128xf32>, vector<32x128xf32> -> vector<32x128xf32>
    %cst_3 = arith.constant dense<0.000000e+00> : vector<128xf32>
    %3 = vector.multi_reduction <add>, %2, %cst_3 [0] : vector<32x128xf32> to vector<128xf32>
    %4 = vector.shape_cast %3 : vector<128xf32> to vector<1x128xf32>
    %c0_4 = arith.constant 0 : index
    %c0_5 = arith.constant 0 : index
    %5 = vector.load %arg9[%c0_4, %c0_5] : memref<2x128xf32, #tpu.memory_space<vmem>>, vector<1x128xf32>
    tpu.vector_store %arg9[%c0_4, %c0_5], %4 {strides = array<i32>} : memref<2x128xf32, #tpu.memory_space<vmem>>, vector<1x128xf32>,
    %6 = arith.mulf %2, %2 : vector<32x128xf32>
    %cst_6 = arith.constant dense<0.000000e+00> : vector<128xf32>
    %7 = vector.multi_reduction <add>, %6, %cst_6 [0] : vector<32x128xf32> to vector<128xf32>
    %8 = vector.shape_cast %7 : vector<128xf32> to vector<1x128xf32>
    %c1 = arith.constant 1 : index
    %c0_7 = arith.constant 0 : index
    %9 = vector.load %arg9[%c1, %c0_7] : memref<2x128xf32, #tpu.memory_space<vmem>>, vector<1x128xf32>
    tpu.vector_store %arg9[%c1, %c0_7], %8 {strides = array<i32>} : memref<2x128xf32, #tpu.memory_space<vmem>>, vector<1x128xf32>,
    %c0_8 = arith.constant 0 : index
    %c0_9 = arith.constant 0 : index
    %10 = vector.load %arg9[%c0_8, %c0_9] : memref<2x128xf32, #tpu.memory_space<vmem>>, vector<2x128xf32>
    %c0_10 = arith.constant 0 : index
    %c0_11 = arith.constant 0 : index
    %11 = vector.load %arg6[%c0_10, %c0_11] : memref<8x128xf32, #tpu.memory_space<vmem>>, vector<8x128xf32>
    %cst_12 = arith.constant dense<0.000000e+00> : vector<2x8xf32>
    %12 = tpu.matmul %10, %11, %cst_12 {dimension_numbers = #tpu.dot_dimension_numbers<[1], [1], [0], [0], [0, 0, 1, 0], [], []>, precision = #tpu.contract_precision<fp32>} : vector<2x128xf32>, vector<8x128xf32>, vector<2x8xf32> -> vector<2x8xf32>
    %cst_13 = arith.constant 0.001953125 : f32
    %13 = vector.broadcast %cst_13 : f32 to vector<2x8xf32>
    %14 = arith.mulf %12, %13 : vector<2x8xf32>
    %15 = vector.extract_strided_slice %14 {offsets = [0, 0], sizes = [1, 8], strides = [1, 1]} : vector<2x8xf32> to vector<1x8xf32>
    %16 = vector.extract_strided_slice %14 {offsets = [1, 0], sizes = [1, 8], strides = [1, 1]} : vector<2x8xf32> to vector<1x8xf32>
    %17 = arith.mulf %15, %15 : vector<1x8xf32>
    %18 = arith.subf %16, %17 : vector<1x8xf32>
    %cst_14 = arith.constant 9.99999974E-6 : f32
    %19 = vector.broadcast %cst_14 : f32 to vector<1x8xf32>
    %20 = arith.addf %18, %19 : vector<1x8xf32>
    %21 = math.rsqrt %20 : vector<1x8xf32>
    %c0_15 = arith.constant 0 : index
    %c0_16 = arith.constant 0 : index
    %22 = vector.load %arg4[%c0_15, %c0_16] : memref<2x8xf32, #tpu.memory_space<vmem>>, vector<1x8xf32>
    %23 = arith.mulf %21, %22 : vector<1x8xf32>
    %c0_17 = arith.constant 0 : index
    %c0_18 = arith.constant 0 : index
    %24 = vector.load %arg10[%c0_17, %c0_18] : memref<2x8xf32, #tpu.memory_space<vmem>>, vector<1x8xf32>
    tpu.vector_store %arg10[%c0_17, %c0_18], %23 {strides = array<i32>} : memref<2x8xf32, #tpu.memory_space<vmem>>, vector<1x8xf32>,
    %c1_19 = arith.constant 1 : index
    %c0_20 = arith.constant 0 : index
    %25 = vector.load %arg4[%c1_19, %c0_20] : memref<2x8xf32, #tpu.memory_space<vmem>>, vector<1x8xf32>
    %26 = arith.mulf %15, %23 : vector<1x8xf32>
    %27 = arith.subf %25, %26 : vector<1x8xf32>
    %c1_21 = arith.constant 1 : index
    %c0_22 = arith.constant 0 : index
    %28 = vector.load %arg10[%c1_21, %c0_22] : memref<2x8xf32, #tpu.memory_space<vmem>>, vector<1x8xf32>
    tpu.vector_store %arg10[%c1_21, %c0_22], %27 {strides = array<i32>} : memref<2x8xf32, #tpu.memory_space<vmem>>, vector<1x8xf32>,
    %c0_23 = arith.constant 0 : index
    %c0_24 = arith.constant 0 : index
    %29 = vector.load %arg10[%c0_23, %c0_24] : memref<2x8xf32, #tpu.memory_space<vmem>>, vector<2x8xf32>
    %c0_25 = arith.constant 0 : index
    %c0_26 = arith.constant 0 : index
    %30 = vector.load %arg6[%c0_25, %c0_26] : memref<8x128xf32, #tpu.memory_space<vmem>>, vector<8x128xf32>
    %cst_27 = arith.constant dense<0.000000e+00> : vector<2x128xf32>
    %31 = tpu.matmul %29, %30, %cst_27 {dimension_numbers = #tpu.dot_dimension_numbers<[1], [0], [0], [1], [0, 0, 1, 1], [], []>, precision = #tpu.contract_precision<fp32>} : vector<2x8xf32>, vector<8x128xf32>, vector<2x128xf32> -> vector<2x128xf32>
    %32 = vector.extract_strided_slice %31 {offsets = [0, 0], sizes = [1, 128], strides = [1, 1]} : vector<2x128xf32> to vector<1x128xf32>
    %33 = vector.broadcast %32 : vector<1x128xf32> to vector<32x128xf32>
    %34 = arith.mulf %2, %33 : vector<32x128xf32>
    %35 = vector.extract_strided_slice %31 {offsets = [1, 0], sizes = [1, 128], strides = [1, 1]} : vector<2x128xf32> to vector<1x128xf32>
    %36 = vector.broadcast %35 : vector<1x128xf32> to vector<32x128xf32>
    %37 = arith.addf %34, %36 : vector<32x128xf32>
    %cst_28 = arith.constant 0.00999999977 : f32
    %38 = vector.broadcast %cst_28 : f32 to vector<32x128xf32>
    %39 = arith.mulf %38, %37 : vector<32x128xf32>
    %40 = arith.maximumf %37, %39 : vector<32x128xf32>
    %41 = tpu.iota {dimensions = array<i32: 0>} : vector<32x1xi32>
    %c16_i32 = arith.constant 16 : i32
    %c0_i32 = arith.constant 0 : i32
    %42 = arith.cmpi eq, %c16_i32, %c0_i32 : i32
    %c1_i32 = arith.constant 1 : i32
    %43 = arith.select %42, %c1_i32, %c16_i32 : i32
    %44 = vector.broadcast %43 : i32 to vector<32x1xi32>
    %45 = arith.remsi %41, %44 : vector<32x1xi32>
    %c0_i32_29 = arith.constant 0 : i32
    %46 = vector.broadcast %c0_i32_29 : i32 to vector<32x1xi32>
    %47 = arith.cmpi ne, %45, %46 : vector<32x1xi32>
    %c0_i32_30 = arith.constant 0 : i32
    %48 = vector.broadcast %c0_i32_30 : i32 to vector<32x1xi32>
    %49 = arith.cmpi slt, %45, %48 : vector<32x1xi32>
    %c0_i32_31 = arith.constant 0 : i32
    %50 = arith.cmpi slt, %43, %c0_i32_31 : i32
    %51 = vector.broadcast %50 : i1 to vector<32x1xi1>
    %52 = vector.broadcast %51 : vector<32x1xi1> to vector<32x1xi1>
    %53 = arith.xori %49, %52 : vector<32x1xi1>
    %54 = arith.andi %53, %47 : vector<32x1xi1>
    %55 = vector.broadcast %43 : i32 to vector<32x1xi32>
    %56 = arith.addi %45, %55 : vector<32x1xi32>
    %57 = arith.select %54, %56, %45 : vector<32x1xi1>, vector<32x1xi32>
    %c0_i32_32 = arith.constant 0 : i32
    %58 = vector.broadcast %c0_i32_32 : i32 to vector<32x1xi32>
    %59 = arith.cmpi sgt, %57, %58 : vector<32x1xi32>
    %c1_i32_33 = arith.constant 1 : i32
    %60 = tpu.dynamic_rotate %40 by %c1_i32_33 dim 0 : vector<32x128xf32>, i32 -> vector<32x128xf32>
    %cst_34 = arith.constant 0.000000e+00 : f32
    %61 = vector.shape_cast %59 : vector<32x1xi1> to vector<32x1xi1>
    %62 = vector.broadcast %61 : vector<32x1xi1> to vector<32x128xi1>
    %63 = vector.broadcast %cst_34 : f32 to vector<32x128xf32>
    %64 = arith.select %62, %60, %63 : vector<32x128xi1>, vector<32x128xf32>
    %c15_i32 = arith.constant 15 : i32
    %65 = vector.broadcast %c15_i32 : i32 to vector<32x1xi32>
    %66 = arith.cmpi slt, %57, %65 : vector<32x1xi32>
    %c31_i32 = arith.constant 31 : i32
    %67 = tpu.dynamic_rotate %40 by %c31_i32 dim 0 : vector<32x128xf32>, i32 -> vector<32x128xf32>
    %cst_35 = arith.constant 0.000000e+00 : f32
    %68 = vector.shape_cast %66 : vector<32x1xi1> to vector<32x1xi1>
    %69 = vector.broadcast %68 : vector<32x1xi1> to vector<32x128xi1>
    %70 = vector.broadcast %cst_35 : f32 to vector<32x128xf32>
    %71 = arith.select %69, %67, %70 : vector<32x128xi1>, vector<32x128xf32>
    %72 = tpu.concatenate %64, %40, %71 in 1 : vector<32x128xf32>, vector<32x128xf32>, vector<32x128xf32> -> vector<32x384xf32>
    %c0_36 = arith.constant 0 : index
    %c0_37 = arith.constant 0 : index
    %73 = vector.load %arg3[%c0_36, %c0_37] : memref<384x128xf32, #tpu.memory_space<vmem>>, vector<384x128xf32>
    %cst_38 = arith.constant dense<0.000000e+00> : vector<32x128xf32>
    %74 = tpu.matmul %72, %73, %cst_38 {dimension_numbers = #tpu.dot_dimension_numbers<[1], [0], [0], [1], [0, 0, 1, 1], [], []>} : vector<32x384xf32>, vector<384x128xf32>, vector<32x128xf32> -> vector<32x128xf32>
    %cst_39 = arith.constant dense<0.000000e+00> : vector<128xf32>
    %75 = vector.multi_reduction <add>, %74, %cst_39 [0] : vector<32x128xf32> to vector<128xf32>
    %76 = vector.shape_cast %75 : vector<128xf32> to vector<1x128xf32>
    %c0_40 = arith.constant 0 : index
    %c0_41 = arith.constant 0 : index
    %77 = vector.load %arg11[%c0_40, %c0_41] : memref<2x128xf32, #tpu.memory_space<vmem>>, vector<1x128xf32>
    tpu.vector_store %arg11[%c0_40, %c0_41], %76 {strides = array<i32>} : memref<2x128xf32, #tpu.memory_space<vmem>>, vector<1x128xf32>,
    %78 = arith.mulf %74, %74 : vector<32x128xf32>
    %cst_42 = arith.constant dense<0.000000e+00> : vector<128xf32>
    %79 = vector.multi_reduction <add>, %78, %cst_42 [0] : vector<32x128xf32> to vector<128xf32>
    %80 = vector.shape_cast %79 : vector<128xf32> to vector<1x128xf32>
    %c1_43 = arith.constant 1 : index
    %c0_44 = arith.constant 0 : index
    %81 = vector.load %arg11[%c1_43, %c0_44] : memref<2x128xf32, #tpu.memory_space<vmem>>, vector<1x128xf32>
    tpu.vector_store %arg11[%c1_43, %c0_44], %80 {strides = array<i32>} : memref<2x128xf32, #tpu.memory_space<vmem>>, vector<1x128xf32>,
    %c0_45 = arith.constant 0 : index
    %c0_46 = arith.constant 0 : index
    %82 = vector.load %arg11[%c0_45, %c0_46] : memref<2x128xf32, #tpu.memory_space<vmem>>, vector<2x128xf32>
    %c0_47 = arith.constant 0 : index
    %c0_48 = arith.constant 0 : index
    %83 = vector.load %arg7[%c0_47, %c0_48] : memref<8x128xf32, #tpu.memory_space<vmem>>, vector<8x128xf32>
    %cst_49 = arith.constant dense<0.000000e+00> : vector<2x8xf32>
    %84 = tpu.matmul %82, %83, %cst_49 {dimension_numbers = #tpu.dot_dimension_numbers<[1], [1], [0], [0], [0, 0, 1, 0], [], []>, precision = #tpu.contract_precision<fp32>} : vector<2x128xf32>, vector<8x128xf32>, vector<2x8xf32> -> vector<2x8xf32>
    %cst_50 = arith.constant 0.001953125 : f32
    %85 = vector.broadcast %cst_50 : f32 to vector<2x8xf32>
    %86 = arith.mulf %84, %85 : vector<2x8xf32>
    %87 = vector.extract_strided_slice %86 {offsets = [0, 0], sizes = [1, 8], strides = [1, 1]} : vector<2x8xf32> to vector<1x8xf32>
    %88 = vector.extract_strided_slice %86 {offsets = [1, 0], sizes = [1, 8], strides = [1, 1]} : vector<2x8xf32> to vector<1x8xf32>
    %89 = arith.mulf %87, %87 : vector<1x8xf32>
    %90 = arith.subf %88, %89 : vector<1x8xf32>
    %cst_51 = arith.constant 9.99999974E-6 : f32
    %91 = vector.broadcast %cst_51 : f32 to vector<1x8xf32>
    %92 = arith.addf %90, %91 : vector<1x8xf32>
    %93 = math.rsqrt %92 : vector<1x8xf32>
    %c0_52 = arith.constant 0 : index
    %c0_53 = arith.constant 0 : index
    %94 = vector.load %arg5[%c0_52, %c0_53] : memref<2x8xf32, #tpu.memory_space<vmem>>, vector<1x8xf32>
    %95 = arith.mulf %93, %94 : vector<1x8xf32>
    %c0_54 = arith.constant 0 : index
    %c0_55 = arith.constant 0 : index
    %96 = vector.load %arg12[%c0_54, %c0_55] : memref<2x8xf32, #tpu.memory_space<vmem>>, vector<1x8xf32>
    tpu.vector_store %arg12[%c0_54, %c0_55], %95 {strides = array<i32>} : memref<2x8xf32, #tpu.memory_space<vmem>>, vector<1x8xf32>,
    %c1_56 = arith.constant 1 : index
    %c0_57 = arith.constant 0 : index
    %97 = vector.load %arg5[%c1_56, %c0_57] : memref<2x8xf32, #tpu.memory_space<vmem>>, vector<1x8xf32>
    %98 = arith.mulf %87, %95 : vector<1x8xf32>
    %99 = arith.subf %97, %98 : vector<1x8xf32>
    %c1_58 = arith.constant 1 : index
    %c0_59 = arith.constant 0 : index
    %100 = vector.load %arg12[%c1_58, %c0_59] : memref<2x8xf32, #tpu.memory_space<vmem>>, vector<1x8xf32>
    tpu.vector_store %arg12[%c1_58, %c0_59], %99 {strides = array<i32>} : memref<2x8xf32, #tpu.memory_space<vmem>>, vector<1x8xf32>,
    %c0_60 = arith.constant 0 : index
    %c0_61 = arith.constant 0 : index
    %101 = vector.load %arg12[%c0_60, %c0_61] : memref<2x8xf32, #tpu.memory_space<vmem>>, vector<2x8xf32>
    %c0_62 = arith.constant 0 : index
    %c0_63 = arith.constant 0 : index
    %102 = vector.load %arg7[%c0_62, %c0_63] : memref<8x128xf32, #tpu.memory_space<vmem>>, vector<8x128xf32>
    %cst_64 = arith.constant dense<0.000000e+00> : vector<2x128xf32>
    %103 = tpu.matmul %101, %102, %cst_64 {dimension_numbers = #tpu.dot_dimension_numbers<[1], [0], [0], [1], [0, 0, 1, 1], [], []>, precision = #tpu.contract_precision<fp32>} : vector<2x8xf32>, vector<8x128xf32>, vector<2x128xf32> -> vector<2x128xf32>
    %104 = vector.extract_strided_slice %103 {offsets = [0, 0], sizes = [1, 128], strides = [1, 1]} : vector<2x128xf32> to vector<1x128xf32>
    %105 = vector.broadcast %104 : vector<1x128xf32> to vector<32x128xf32>
    %106 = arith.mulf %74, %105 : vector<32x128xf32>
    %107 = vector.extract_strided_slice %103 {offsets = [1, 0], sizes = [1, 128], strides = [1, 1]} : vector<2x128xf32> to vector<1x128xf32>
    %108 = vector.broadcast %107 : vector<1x128xf32> to vector<32x128xf32>
    %109 = arith.addf %106, %108 : vector<32x128xf32>
    %cst_65 = arith.constant 0.00999999977 : f32
    %110 = vector.broadcast %cst_65 : f32 to vector<32x128xf32>
    %111 = arith.mulf %110, %109 : vector<32x128xf32>
    %112 = arith.maximumf %109, %111 : vector<32x128xf32>
    %c0_66 = arith.constant 0 : index
    %c0_67 = arith.constant 0 : index
    %113 = vector.load %arg1[%c0_66, %c0_67] : memref<32x128xf32, #tpu.memory_space<vmem>>, vector<32x128xf32>
    %114 = arith.addf %112, %113 : vector<32x128xf32>
    %c0_68 = arith.constant 0 : index
    %c0_69 = arith.constant 0 : index
    %115 = vector.load %arg8[%c0_68, %c0_69] : memref<32x128xf32, #tpu.memory_space<vmem>>, vector<32x128xf32>
    tpu.vector_store %arg8[%c0_68, %c0_69], %114 {strides = array<i32>} : memref<32x128xf32, #tpu.memory_space<vmem>>, vector<32x128xf32>,
    return
  }
  func.func @transform_0(%arg0: i32) -> (i32, i32) {
    %c0_i32 = arith.constant 0 : i32
    %c0_i32_0 = arith.constant 0 : i32
    %c0_i32_1 = arith.constant 0 : i32
    return %c0_i32, %c0_i32_0 : i32, i32
  }
  func.func @transform_1(%arg0: i32) -> (i32, i32) {
    %c0_i32 = arith.constant 0 : i32
    %c0_i32_0 = arith.constant 0 : i32
    %c0_i32_1 = arith.constant 0 : i32
    return %c0_i32, %c0_i32_0 : i32, i32
  }
  func.func @transform_2(%arg0: i32) -> (i32, i32) {
    %c0_i32 = arith.constant 0 : i32
    %c0_i32_0 = arith.constant 0 : i32
    %c0_i32_1 = arith.constant 0 : i32
    return %c0_i32, %c0_i32_0 : i32, i32
  }
  func.func @transform_3(%arg0: i32) -> (i32, i32) {
    %c0_i32 = arith.constant 0 : i32
    %c0_i32_0 = arith.constant 0 : i32
    %c0_i32_1 = arith.constant 0 : i32
    return %c0_i32, %c0_i32_0 : i32, i32
  }
  func.func @transform_4(%arg0: i32) -> (i32, i32) {
    %c0_i32 = arith.constant 0 : i32
    %c0_i32_0 = arith.constant 0 : i32
    %c0_i32_1 = arith.constant 0 : i32
    return %c0_i32, %c0_i32_0 : i32, i32
  }
  func.func @transform_5(%arg0: i32) -> (i32, i32) {
    %c0_i32 = arith.constant 0 : i32
    %c0_i32_0 = arith.constant 0 : i32
    %c0_i32_1 = arith.constant 0 : i32
    return %c0_i32, %c0_i32_0 : i32, i32
  }
  func.func @transform_6(%arg0: i32) -> (i32, i32) {
    %c0_i32 = arith.constant 0 : i32
    %c0_i32_0 = arith.constant 0 : i32
    %c0_i32_1 = arith.constant 0 : i32
    return %c0_i32, %c0_i32_0 : i32, i32
  }
  func.func @transform_7(%arg0: i32) -> (i32, i32) {
    %c0_i32 = arith.constant 0 : i32
    %c0_i32_0 = arith.constant 0 : i32
    %c0_i32_1 = arith.constant 0 : i32
    return %c0_i32, %c0_i32_0 : i32, i32
  }
}

</mosaic_0001>

<llo_original>
// kernel: tpu_custom_call.1
$region0: #{tpu_custom_call.1}
  #allocation0 [shape = 'u32[]', space=smem, size = 0x4, offset = 0x4, fixed_abs, tag = 'smem constant byte address 0x4 - core index']
  #allocation1 [shape = 'u32[144,128]{1,0:T(1,128)}', space=vmem, size = 0x12000, scoped, tag = 'internal scratch']
  #allocation2 [shape = 'f32[2,128]{1,0:T(2,128)}', space=vmem, size = 0x400, scoped, tag = 'scratch operand']
  #allocation3 [shape = 'f32[2,8]{1,0:T(2,128)}', space=vmem, size = 0x400, scoped, tag = 'scratch operand']
  #allocation4 [shape = 'f32[2,128]{1,0:T(2,128)}', space=vmem, size = 0x400, scoped, tag = 'scratch operand']
  #allocation5 [shape = 'f32[2,8]{1,0:T(2,128)}', space=vmem, size = 0x400, scoped, tag = 'scratch operand']
  %s0 = inlined_call_operand.hbm [shape: f32[32,128], index: 0, kind: input, shape index: {}]
  %s1 = inlined_call_operand.hbm [shape: f32[128,128], index: 1, kind: input, shape index: {}]
  %s2 = inlined_call_operand.hbm [shape: f32[384,128], index: 2, kind: input, shape index: {}]
  %s3 = inlined_call_operand.vmem [shape: f32[2,8], index: 3, kind: input, shape index: {}]
  %s4 = inlined_call_operand.hbm [shape: f32[2,8], index: 4, kind: input, shape index: {}]
  %s5 = inlined_call_operand.vmem [shape: f32[8,128], index: 5, kind: input, shape index: {}]
  %s6 = inlined_call_operand.vmem [shape: f32[8,128], index: 6, kind: input, shape index: {}]
  %s7 = inlined_call_operand.hbm [shape: f32[32,128], index: 7, kind: output, shape index: {}]
  %s8 = sld [smem:[#allocation0]]
  $region54: #{tpu_custom_call.1} parent=0
    _
  %s10 = ssub.s32 1, %s8
  %s11 = scalar_select 0, %s10, %s8
  $region1: #{tpu_custom_call.1} parent=0
    #allocation6 [shape = 'u8[16384]{0}', space=vmem, size = 0x4000, scoped, tag = 'input window, operand 0, single buffered']
    #allocation7 [shape = 's32[1]{0}', space=sflag, size = 0x4, scoped, tag = 'scoped memory for tpu_custom_call.1']
    #allocation8 [shape = 's32[1]{0}', space=sflag, size = 0x4, scoped, tag = 'scoped memory for tpu_custom_call.1']
    #allocation9 [shape = 'u8[65536]{0}', space=vmem, size = 0x10000, scoped, tag = 'input window, operand 1, single buffered']
    #allocation10 [shape = 's32[1]{0}', space=sflag, size = 0x4, scoped, tag = 'scoped memory for tpu_custom_call.1']
    #allocation11 [shape = 'u8[196608]{0}', space=vmem, size = 0x30000, scoped, tag = 'input window, operand 2, single buffered']
    #allocation12 [shape = 'u8[1024]{0}', space=vmem, size = 0x400, scoped, tag = 'input window, operand 4, single buffered']
    #allocation13 [shape = 's32[1]{0}', space=sflag, size = 0x4, scoped, tag = 'scoped memory for tpu_custom_call.1']
    #allocation14 [shape = 'u8[16384]{0}', space=vmem, size = 0x4000, scoped, tag = 'output window, operand 0, single buffered']
    %12 = vsyncpa [#allocation7], 0
    %13 = vsyncpa [#allocation10], 0
    %14 = vsyncpa [#allocation13], 0
    %15 = vsyncpa [#allocation8], 0
    // Predicated region
    $region2: #{tpu_custom_call.1} parent=1 // pred_check
      _
    $region3: #{tpu_custom_call.1} parent=1 // pred_check_branch
      %17 = sbr.rel (0) target = $region5
    $region4: #{tpu_custom_call.1} parent=1 // pred_region
      %s19 = ssub.s32 512, 512
      %20 = vsyncadd [#allocation7], %s19
      %s21 = sshll.u32 [#allocation6], 4
      %s22 = int_to_ptr.vmem [resolvable:$true] %s21
      %27 = dma.hbm_to_vmem [thread:$0]  %s0, 512, %s22, [#allocation7], 128, 128, 8
    $region5: #{tpu_custom_call.1} parent=1 // pred_fallthru
      _
    // Predicated region
    $region6: #{tpu_custom_call.1} parent=1 // pred_check
      _
    $region7: #{tpu_custom_call.1} parent=1 // pred_check_branch
      %29 = sbr.rel (0) target = $region9
    $region8: #{tpu_custom_call.1} parent=1 // pred_region
      %s31 = ssub.s32 2048, 2048
      %32 = vsyncadd [#allocation10], %s31
      %s33 = sshll.u32 [#allocation9], 4
      %s34 = int_to_ptr.vmem [resolvable:$true] %s33
      %39 = dma.hbm_to_vmem [thread:$0]  %s1, 2048, %s34, [#allocation10], 128, 128, 8
    $region9: #{tpu_custom_call.1} parent=1 // pred_fallthru
      _
    // Predicated region
    $region10: #{tpu_custom_call.1} parent=1 // pred_check
      _
    $region11: #{tpu_custom_call.1} parent=1 // pred_check_branch
      %41 = sbr.rel (0) target = $region13
    $region12: #{tpu_custom_call.1} parent=1 // pred_region
      %s43 = ssub.s32 6144, 6144
      %44 = vsyncadd [#allocation10], %s43
      %s45 = sshll.u32 [#allocation11], 4
      %s46 = int_to_ptr.vmem [resolvable:$true] %s45
      %51 = dma.hbm_to_vmem [thread:$0]  %s2, 6144, %s46, [#allocation10], 128, 128, 8
    $region13: #{tpu_custom_call.1} parent=1 // pred_fallthru
      _
    // Predicated region
    $region14: #{tpu_custom_call.1} parent=1 // pred_check
      _
    $region15: #{tpu_custom_call.1} parent=1 // pred_check_branch
      %53 = sbr.rel (0) target = $region17
    $region16: #{tpu_custom_call.1} parent=1 // pred_region
      _
    $region17: #{tpu_custom_call.1} parent=1 // pred_fallthru
      _
    // Predicated region
    $region18: #{tpu_custom_call.1} parent=1 // pred_check
      _
    $region19: #{tpu_custom_call.1} parent=1 // pred_check_branch
      %55 = sbr.rel (0) target = $region21
    $region20: #{tpu_custom_call.1} parent=1 // pred_region
      %s57 = ssub.s32 32, 32
      %58 = vsyncadd [#allocation13], %s57
      %s60 = sshll.u32 [#allocation12], 4
      %s61 = int_to_ptr.vmem [resolvable:$true] %s60
      %63 = dma.hbm_to_vmem [thread:$0]  %s4, 32, %s61, [#allocation13]
    $region21: #{tpu_custom_call.1} parent=1 // pred_fallthru
      _
    // Predicated region
    $region22: #{tpu_custom_call.1} parent=1 // pred_check
      _
    $region23: #{tpu_custom_call.1} parent=1 // pred_check_branch
      %65 = sbr.rel (0) target = $region25
    $region24: #{tpu_custom_call.1} parent=1 // pred_region
      _
    $region25: #{tpu_custom_call.1} parent=1 // pred_fallthru
      _
    // Predicated region
    $region26: #{tpu_custom_call.1} parent=1 // pred_check
      _
    $region27: #{tpu_custom_call.1} parent=1 // pred_check_branch
      %67 = sbr.rel (0) target = $region29
    $region28: #{tpu_custom_call.1} parent=1 // pred_region
      _
    $region29: #{tpu_custom_call.1} parent=1 // pred_fallthru
      _
    // Predicated region
    $region30: #{tpu_custom_call.1} parent=1 // pred_check
      _
    $region31: #{tpu_custom_call.1} parent=1 // pred_check_branch
      %69 = sbr.rel (0) target = $region33
    $region32: #{tpu_custom_call.1} parent=1 // pred_region
      %70 = dma.done [#allocation7], 512
    $region33: #{tpu_custom_call.1} parent=1 // pred_fallthru
      _
    // Predicated region
    $region34: #{tpu_custom_call.1} parent=1 // pred_check
      _
    $region35: #{tpu_custom_call.1} parent=1 // pred_check_branch
      %72 = sbr.rel (0) target = $region37
    $region36: #{tpu_custom_call.1} parent=1 // pred_region
      %73 = dma.done [#allocation10], 2048
    $region37: #{tpu_custom_call.1} parent=1 // pred_fallthru
      _
    // Predicated region
    $region38: #{tpu_custom_call.1} parent=1 // pred_check
      _
    $region39: #{tpu_custom_call.1} parent=1 // pred_check_branch
      %75 = sbr.rel (0) target = $region41
    $region40: #{tpu_custom_call.1} parent=1 // pred_region
      %76 = dma.done [#allocation10], 6144
    $region41: #{tpu_custom_call.1} parent=1 // pred_fallthru
      _
    // Predicated region
    $region42: #{tpu_custom_call.1} parent=1 // pred_check
      _
    $region43: #{tpu_custom_call.1} parent=1 // pred_check_branch
      %78 = sbr.rel (0) target = $region45
    $region44: #{tpu_custom_call.1} parent=1 // pred_region
      %79 = dma.done [#allocation13], 32
    $region45: #{tpu_custom_call.1} parent=1 // pred_fallthru
      _
    %v80 = vld [vmem:[#allocation6] sm:$0xff]
    %v81 = vld [vmem:[#allocation6 + $0x8] sm:$0xff]
    %v82 = vld [vmem:[#allocation6 + $0x10] sm:$0xff]
    %v83 = vld [vmem:[#allocation6 + $0x18] sm:$0xff]
    %v84 = vld [vmem:[#allocation9] sm:$0xff]
    %v85 = vld [vmem:[#allocation9 + $0x8] sm:$0xff]
    %v86 = vld [vmem:[#allocation9 + $0x10] sm:$0xff]
    %v87 = vld [vmem:[#allocation9 + $0x18] sm:$0xff]
    %v88 = vld [vmem:[#allocation9 + $0x20] sm:$0xff]
    %v89 = vld [vmem:[#allocation9 + $0x28] sm:$0xff]
    %v90 = vld [vmem:[#allocation9 + $0x30] sm:$0xff]
    %v91 = vld [vmem:[#allocation9 + $0x38] sm:$0xff]
    %v92 = vld [vmem:[#allocation9 + $0x40] sm:$0xff]
    %v93 = vld [vmem:[#allocation9 + $0x48] sm:$0xff]
    %v94 = vld [vmem:[#allocation9 + $0x50] sm:$0xff]
    %v95 = vld [vmem:[#allocation9 + $0x58] sm:$0xff]
    %v96 = vld [vmem:[#allocation9 + $0x60] sm:$0xff]
    %v97 = vld [vmem:[#allocation9 + $0x68] sm:$0xff]
    %v98 = vld [vmem:[#allocation9 + $0x70] sm:$0xff]
    %v99 = vld [vmem:[#allocation9 + $0x78] sm:$0xff]
    %100 = vmatprep.subr.mxu0 0.0
    %101 = vmatpush1.msra.mxu0 %v84
    %102 = vmatprep.subr.mxu0 0.0
    %103 = vmatpush1.msra.mxu0 %v85
    %104 = vmatprep.subr.mxu0 0.0
    %105 = vmatpush1.msra.mxu0 %v86
    %106 = vmatprep.subr.mxu0 0.0
    %107 = vmatpush1.msra.mxu0 %v87
    %108 = vmatprep.subr.mxu0 0.0
    %109 = vmatpush1.msra.mxu0 %v88
    %110 = vmatprep.subr.mxu0 0.0
    %111 = vmatpush1.msra.mxu0 %v89
    %112 = vmatprep.subr.mxu0 0.0
    %113 = vmatpush1.msra.mxu0 %v90
    %114 = vmatprep.subr.mxu0 0.0
    %115 = vmatpush1.msra.mxu0 %v91
    %116 = vmatprep.subr.mxu0 0.0
    %117 = vmatpush1.msra.mxu0 %v92
    %118 = vmatprep.subr.mxu0 0.0
    %119 = vmatpush1.msra.mxu0 %v93
    %120 = vmatprep.subr.mxu0 0.0
    %121 = vmatpush1.msra.mxu0 %v94
    %122 = vmatprep.subr.mxu0 0.0
    %123 = vmatpush1.msra.mxu0 %v95
    %124 = vmatprep.subr.mxu0 0.0
    %125 = vmatpush1.msra.mxu0 %v96
    %126 = vmatprep.subr.mxu0 0.0
    %127 = vmatpush1.msra.mxu0 %v97
    %128 = vmatprep.subr.mxu0 0.0
    %129 = vmatpush1.msra.mxu0 %v98
    %130 = vmatprep.subr.mxu0 0.0
    %131 = vmatpush1.msra.mxu0 %v99
    %132 = vmatprep.subr.mxu0 0.0
    %133 = vmatpush1.msra.mxu0 0.0
    %134 = vmatprep.subr.mxu0 0.0
    %135 = vmatpush1.msra.mxu0 0.0
    %136 = vmatprep.subr.mxu0 0.0
    %137 = vmatpush1.msra.mxu0 0.0
    %138 = vmatprep.subr.mxu0 0.0
    %139 = vmatpush1.msra.mxu0 0.0
    %140 = vmatprep.subr.mxu0 0.0
    %141 = vmatpush1.msra.mxu0 0.0
    %142 = vmatprep.subr.mxu0 0.0
    %143 = vmatpush1.msra.mxu0 0.0
    %144 = vmatprep.subr.mxu0 0.0
    %145 = vmatpush1.msra.mxu0 0.0
    %146 = vmatprep.subr.mxu0 0.0
    %147 = vmatpush1.msra.mxu0 0.0
    %148 = vmatprep.subr.mxu0 0.0
    %149 = vmatpush1.msra.mxu0 0.0
    %150 = vmatprep.subr.mxu0 0.0
    %151 = vmatpush1.msra.mxu0 0.0
    %152 = vmatprep.subr.mxu0 0.0
    %153 = vmatpush1.msra.mxu0 0.0
    %154 = vmatprep.subr.mxu0 0.0
    %155 = vmatpush1.msra.mxu0 0.0
    %156 = vmatprep.subr.mxu0 0.0
    %157 = vmatpush1.msra.mxu0 0.0
    %158 = vmatprep.subr.mxu0 0.0
    %159 = vmatpush1.msra.mxu0 0.0
    %160 = vmatprep.subr.mxu0 0.0
    %161 = vmatpush1.msra.mxu0 0.0
    %162 = vmatprep.subr.mxu0 0.0
    %163 = vmatpush1.msra.mxu0 0.0
    %164 = vmatprep.mubr.f32.mxu0 0.0
    %165 = vmatmul.mubr.f32.gmra.mrb[0].mxu0 %v80
    %v166 = vpop.f32.mrb[0].mxu0
    %v167 = vadd.f32 0.0, %v166
    %v168 = vpop.f32.mrb[0].mxu0
    %169 = vmatprep.mubr.f32.mxu0 0.0
    %170 = vmatmul.mubr.f32.gmra.mrb[0].mxu0 %v81
    %v171 = vpop.f32.mrb[0].mxu0
    %v172 = vadd.f32 0.0, %v171
    %v173 = vpop.f32.mrb[0].mxu0
    %174 = vmatprep.mubr.f32.mxu0 0.0
    %175 = vmatmul.mubr.f32.gmra.mrb[0].mxu0 %v82
    %v176 = vpop.f32.mrb[0].mxu0
    %v177 = vadd.f32 0.0, %v176
    %v178 = vpop.f32.mrb[0].mxu0
    %179 = vmatprep.mubr.f32.mxu0 0.0
    %180 = vmatmul.mubr.f32.gmra.mrb[0].mxu0 %v83
    %v181 = vpop.f32.mrb[0].mxu0
    %v182 = vadd.f32 0.0, %v181
    %v183 = vpop.f32.mrb[0].mxu0
    %184 = vdwg.mxu0
    %v185 = vadd.f32 %v167, %v172
    %v186 = vadd.f32 %v185, %v177
    %v187 = vadd.f32 %v186, %v182
    %v188 = vrot.slane %v187, 4
    %v189 = vadd.f32 %v187, %v188
    %v190 = vrot.slane %v189, 2
    %v191 = vadd.f32 %v189, %v190
    %v192 = vrot.slane %v191, 1
    %v193 = vadd.f32 %v191, %v192
    %194 = vst [vmem:[#allocation2] sm:$0x1] %v193
    %v195 = vmul.f32 %v167, %v167
    %v196 = vmul.f32 %v172, %v172
    %v197 = vmul.f32 %v177, %v177
    %v198 = vmul.f32 %v182, %v182
    %v199 = vadd.f32 %v195, %v196
    %v200 = vadd.f32 %v199, %v197
    %v201 = vadd.f32 %v200, %v198
    %v202 = vrot.slane %v201, 4
    %v203 = vadd.f32 %v201, %v202
    %v204 = vrot.slane %v203, 2
    %v205 = vadd.f32 %v203, %v204
    %v206 = vrot.slane %v205, 1
    %v207 = vadd.f32 %v205, %v206
    %208 = vst [vmem:[#allocation2 + $0x1] sm:$0x1] %v207
    %v209 = vld [vmem:[#allocation2] sm:$0x3]
    %v210 = vld [vmem:[%s5] sm:$0xff]
    %211 = vmatprep.subr.mxu0 0.0
    %v212 = vand.u32 %v210, 4294901760
    %213 = vmatpush1.xpose.msra.mxu0 %v212
    %214 = vmatprep.subr.mxu0 0.0
    %215 = vmatpush1.xpose.msra.mxu0 0.0
    %216 = vmatprep.subr.mxu0 0.0
    %217 = vmatpush1.xpose.msra.mxu0 0.0
    %218 = vmatprep.subr.mxu0 0.0
    %219 = vmatpush1.xpose.msra.mxu0 0.0
    %220 = vmatprep.subr.mxu0 0.0
    %221 = vmatpush1.xpose.msra.mxu0 0.0
    %222 = vmatprep.subr.mxu0 0.0
    %223 = vmatpush1.xpose.msra.mxu0 0.0
    %224 = vmatprep.subr.mxu0 0.0
    %225 = vmatpush1.xpose.msra.mxu0 0.0
    %226 = vmatprep.subr.mxu0 0.0
    %227 = vmatpush1.xpose.msra.mxu0 0.0
    %228 = vmatprep.subr.mxu0 0.0
    %229 = vmatpush1.xpose.msra.mxu0 0.0
    %230 = vmatprep.subr.mxu0 0.0
    %231 = vmatpush1.xpose.msra.mxu0 0.0
    %232 = vmatprep.subr.mxu0 0.0
    %233 = vmatpush1.xpose.msra.mxu0 0.0
    %234 = vmatprep.subr.mxu0 0.0
    %235 = vmatpush1.xpose.msra.mxu0 0.0
    %236 = vmatprep.subr.mxu0 0.0
    %237 = vmatpush1.xpose.msra.mxu0 0.0
    %238 = vmatprep.subr.mxu0 0.0
    %239 = vmatpush1.xpose.msra.mxu0 0.0
    %240 = vmatprep.subr.mxu0 0.0
    %241 = vmatpush1.xpose.msra.mxu0 0.0
    %242 = vmatprep.subr.mxu0 0.0
    %243 = vmatpush1.xpose.msra.mxu0 0.0
    %244 = vmatprep.subr.mxu0 0.0
    %245 = vmatpush1.xpose.msra.mxu0 0.0
    %246 = vmatprep.subr.mxu0 0.0
    %247 = vmatpush1.xpose.msra.mxu0 0.0
    %248 = vmatprep.subr.mxu0 0.0
    %249 = vmatpush1.xpose.msra.mxu0 0.0
    %250 = vmatprep.subr.mxu0 0.0
    %251 = vmatpush1.xpose.msra.mxu0 0.0
    %252 = vmatprep.subr.mxu0 0.0
    %253 = vmatpush1.xpose.msra.mxu0 0.0
    %254 = vmatprep.subr.mxu0 0.0
    %255 = vmatpush1.xpose.msra.mxu0 0.0
    %256 = vmatprep.subr.mxu0 0.0
    %257 = vmatpush1.xpose.msra.mxu0 0.0
    %258 = vmatprep.subr.mxu0 0.0
    %259 = vmatpush1.xpose.msra.mxu0 0.0
    %260 = vmatprep.subr.mxu0 0.0
    %261 = vmatpush1.xpose.msra.mxu0 0.0
    %262 = vmatprep.subr.mxu0 0.0
    %263 = vmatpush1.xpose.msra.mxu0 0.0
    %264 = vmatprep.subr.mxu0 0.0
    %265 = vmatpush1.xpose.msra.mxu0 0.0
    %266 = vmatprep.subr.mxu0 0.0
    %267 = vmatpush1.xpose.msra.mxu0 0.0
    %268 = vmatprep.subr.mxu0 0.0
    %269 = vmatpush1.xpose.msra.mxu0 0.0
    %270 = vmatprep.subr.mxu0 0.0
    %271 = vmatpush1.xpose.msra.mxu0 0.0
    %272 = vmatprep.subr.mxu0 0.0
    %273 = vmatpush1.xpose.msra.mxu0 0.0
    %274 = vmatprep.subr.mxu0 0.0
    %275 = vmatpush1.xpose.msra.mxu0 0.0
    %276 = vmatprep.mubr.f32.mxu0 0.0
    %v277 = vand.u32 %v209, 4294901760
    %v278 = vsub.f32 %v209, %v277
    %v279 = vand.u32 %v278, 4294901760
    %v280 = vsub.f32 %v278, %v279
    %v281 = vand.u32 %v280, 4294901760
    %282 = vmatmul.mubr.f32.gmra.mrb[0].mxu0 %v281
    %v283 = vpop.f32.mrb[0].mxu0
    %v284 = vadd.f32 0.0, %v283
    %v285 = vpop.f32.mrb[0].mxu0
    %286 = vdwg.mxu0
    %287 = vmatprep.subr.mxu0 0.0
    %v288 = vand.u32 %v210, 4294901760
    %v289 = vsub.f32 %v210, %v288
    %v290 = vand.u32 %v289, 4294901760
    %v291 = vsub.f32 %v289, %v290
    %v292 = vand.u32 %v291, 4294901760
    %293 = vmatpush1.xpose.msra.mxu0 %v292
    %294 = vmatprep.subr.mxu0 0.0
    %295 = vmatpush1.xpose.msra.mxu0 0.0
    %296 = vmatprep.subr.mxu0 0.0
    %297 = vmatpush1.xpose.msra.mxu0 0.0
    %298 = vmatprep.subr.mxu0 0.0
    %299 = vmatpush1.xpose.msra.mxu0 0.0
    %300 = vmatprep.subr.mxu0 0.0
    %301 = vmatpush1.xpose.msra.mxu0 0.0
    %302 = vmatprep.subr.mxu0 0.0
    %303 = vmatpush1.xpose.msra.mxu0 0.0
    %304 = vmatprep.subr.mxu0 0.0
    %305 = vmatpush1.xpose.msra.mxu0 0.0
    %306 = vmatprep.subr.mxu0 0.0
    %307 = vmatpush1.xpose.msra.mxu0 0.0
    %308 = vmatprep.subr.mxu0 0.0
    %309 = vmatpush1.xpose.msra.mxu0 0.0
    %310 = vmatprep.subr.mxu0 0.0
    %311 = vmatpush1.xpose.msra.mxu0 0.0
    %312 = vmatprep.subr.mxu0 0.0
    %313 = vmatpush1.xpose.msra.mxu0 0.0
    %314 = vmatprep.subr.mxu0 0.0
    %315 = vmatpush1.xpose.msra.mxu0 0.0
    %316 = vmatprep.subr.mxu0 0.0
    %317 = vmatpush1.xpose.msra.mxu0 0.0
    %318 = vmatprep.subr.mxu0 0.0
    %319 = vmatpush1.xpose.msra.mxu0 0.0
    %320 = vmatprep.subr.mxu0 0.0
    %321 = vmatpush1.xpose.msra.mxu0 0.0
    %322 = vmatprep.subr.mxu0 0.0
    %323 = vmatpush1.xpose.msra.mxu0 0.0
    %324 = vmatprep.subr.mxu0 0.0
    %325 = vmatpush1.xpose.msra.mxu0 0.0
    %326 = vmatprep.subr.mxu0 0.0
    %327 = vmatpush1.xpose.msra.mxu0 0.0
    %328 = vmatprep.subr.mxu0 0.0
    %329 = vmatpush1.xpose.msra.mxu0 0.0
    %330 = vmatprep.subr.mxu0 0.0
    %331 = vmatpush1.xpose.msra.mxu0 0.0
    %332 = vmatprep.subr.mxu0 0.0
    %333 = vmatpush1.xpose.msra.mxu0 0.0
    %334 = vmatprep.subr.mxu0 0.0
    %335 = vmatpush1.xpose.msra.mxu0 0.0
    %336 = vmatprep.subr.mxu0 0.0
    %337 = vmatpush1.xpose.msra.mxu0 0.0
    %338 = vmatprep.subr.mxu0 0.0
    %339 = vmatpush1.xpose.msra.mxu0 0.0
    %340 = vmatprep.subr.mxu0 0.0
    %341 = vmatpush1.xpose.msra.mxu0 0.0
    %342 = vmatprep.subr.mxu0 0.0
    %343 = vmatpush1.xpose.msra.mxu0 0.0
    %344 = vmatprep.subr.mxu0 0.0
    %345 = vmatpush1.xpose.msra.mxu0 0.0
    %346 = vmatprep.subr.mxu0 0.0
    %347 = vmatpush1.xpose.msra.mxu0 0.0
    %348 = vmatprep.subr.mxu0 0.0
    %349 = vmatpush1.xpose.msra.mxu0 0.0
    %350 = vmatprep.subr.mxu0 0.0
    %351 = vmatpush1.xpose.msra.mxu0 0.0
    %352 = vmatprep.subr.mxu0 0.0
    %353 = vmatpush1.xpose.msra.mxu0 0.0
    %354 = vmatprep.subr.mxu0 0.0
    %355 = vmatpush1.xpose.msra.mxu0 0.0
    %356 = vmatprep.mubr.f32.mxu0 0.0
    %v357 = vand.u32 %v209, 4294901760
    %358 = vmatmul.mubr.f32.gmra.mrb[0].mxu0 %v357
    %v359 = vpop.f32.mrb[0].mxu0
    %v360 = vadd.f32 %v284, %v359
    %v361 = vpop.f32.mrb[0].mxu0
    %362 = vdwg.mxu0
    %363 = vmatprep.subr.mxu0 0.0
    %v364 = vand.u32 %v210, 4294901760
    %v365 = vsub.f32 %v210, %v364
    %366 = vmatpush1.xpose.msra.mxu0 %v365
    %367 = vmatprep.subr.mxu0 0.0
    %368 = vmatpush1.xpose.msra.mxu0 0.0
    %369 = vmatprep.subr.mxu0 0.0
    %370 = vmatpush1.xpose.msra.mxu0 0.0
    %371 = vmatprep.subr.mxu0 0.0
    %372 = vmatpush1.xpose.msra.mxu0 0.0
    %373 = vmatprep.subr.mxu0 0.0
    %374 = vmatpush1.xpose.msra.mxu0 0.0
    %375 = vmatprep.subr.mxu0 0.0
    %376 = vmatpush1.xpose.msra.mxu0 0.0
    %377 = vmatprep.subr.mxu0 0.0
    %378 = vmatpush1.xpose.msra.mxu0 0.0
    %379 = vmatprep.subr.mxu0 0.0
    %380 = vmatpush1.xpose.msra.mxu0 0.0
    %381 = vmatprep.subr.mxu0 0.0
    %382 = vmatpush1.xpose.msra.mxu0 0.0
    %383 = vmatprep.subr.mxu0 0.0
    %384 = vmatpush1.xpose.msra.mxu0 0.0
    %385 = vmatprep.subr.mxu0 0.0
    %386 = vmatpush1.xpose.msra.mxu0 0.0
    %387 = vmatprep.subr.mxu0 0.0
    %388 = vmatpush1.xpose.msra.mxu0 0.0
    %389 = vmatprep.subr.mxu0 0.0
    %390 = vmatpush1.xpose.msra.mxu0 0.0
    %391 = vmatprep.subr.mxu0 0.0
    %392 = vmatpush1.xpose.msra.mxu0 0.0
    %393 = vmatprep.subr.mxu0 0.0
    %394 = vmatpush1.xpose.msra.mxu0 0.0
    %395 = vmatprep.subr.mxu0 0.0
    %396 = vmatpush1.xpose.msra.mxu0 0.0
    %397 = vmatprep.subr.mxu0 0.0
    %398 = vmatpush1.xpose.msra.mxu0 0.0
    %399 = vmatprep.subr.mxu0 0.0
    %400 = vmatpush1.xpose.msra.mxu0 0.0
    %401 = vmatprep.subr.mxu0 0.0
    %402 = vmatpush1.xpose.msra.mxu0 0.0
    %403 = vmatprep.subr.mxu0 0.0
    %404 = vmatpush1.xpose.msra.mxu0 0.0
    %405 = vmatprep.subr.mxu0 0.0
    %406 = vmatpush1.xpose.msra.mxu0 0.0
    %407 = vmatprep.subr.mxu0 0.0
    %408 = vmatpush1.xpose.msra.mxu0 0.0
    %409 = vmatprep.subr.mxu0 0.0
    %410 = vmatpush1.xpose.msra.mxu0 0.0
    %411 = vmatprep.subr.mxu0 0.0
    %412 = vmatpush1.xpose.msra.mxu0 0.0
    %413 = vmatprep.subr.mxu0 0.0
    %414 = vmatpush1.xpose.msra.mxu0 0.0
    %415 = vmatprep.subr.mxu0 0.0
    %416 = vmatpush1.xpose.msra.mxu0 0.0
    %417 = vmatprep.subr.mxu0 0.0
    %418 = vmatpush1.xpose.msra.mxu0 0.0
    %419 = vmatprep.subr.mxu0 0.0
    %420 = vmatpush1.xpose.msra.mxu0 0.0
    %421 = vmatprep.subr.mxu0 0.0
    %422 = vmatpush1.xpose.msra.mxu0 0.0
    %423 = vmatprep.subr.mxu0 0.0
    %424 = vmatpush1.xpose.msra.mxu0 0.0
    %425 = vmatprep.subr.mxu0 0.0
    %426 = vmatpush1.xpose.msra.mxu0 0.0
    %427 = vmatprep.subr.mxu0 0.0
    %428 = vmatpush1.xpose.msra.mxu0 0.0
    %429 = vmatprep.mubr.f32.mxu0 0.0
    %v430 = vand.u32 %v209, 4294901760
    %v431 = vsub.f32 %v209, %v430
    %432 = vmatmul.mubr.f32.gmra.mrb[0].mxu0 %v431
    %v433 = vpop.f32.mrb[0].mxu0
    %v434 = vadd.f32 %v360, %v433
    %v435 = vpop.f32.mrb[0].mxu0
    %436 = vdwg.mxu0
    %437 = vmatprep.subr.mxu0 0.0
    %v438 = vand.u32 %v210, 4294901760
    %439 = vmatpush1.xpose.msra.mxu0 %v438
    %440 = vmatprep.subr.mxu0 0.0
    %441 = vmatpush1.xpose.msra.mxu0 0.0
    %442 = vmatprep.subr.mxu0 0.0
    %443 = vmatpush1.xpose.msra.mxu0 0.0
    %444 = vmatprep.subr.mxu0 0.0
    %445 = vmatpush1.xpose.msra.mxu0 0.0
    %446 = vmatprep.subr.mxu0 0.0
    %447 = vmatpush1.xpose.msra.mxu0 0.0
    %448 = vmatprep.subr.mxu0 0.0
    %449 = vmatpush1.xpose.msra.mxu0 0.0
    %450 = vmatprep.subr.mxu0 0.0
    %451 = vmatpush1.xpose.msra.mxu0 0.0
    %452 = vmatprep.subr.mxu0 0.0
    %453 = vmatpush1.xpose.msra.mxu0 0.0
    %454 = vmatprep.subr.mxu0 0.0
    %455 = vmatpush1.xpose.msra.mxu0 0.0
    %456 = vmatprep.subr.mxu0 0.0
    %457 = vmatpush1.xpose.msra.mxu0 0.0
    %458 = vmatprep.subr.mxu0 0.0
    %459 = vmatpush1.xpose.msra.mxu0 0.0
    %460 = vmatprep.subr.mxu0 0.0
    %461 = vmatpush1.xpose.msra.mxu0 0.0
    %462 = vmatprep.subr.mxu0 0.0
    %463 = vmatpush1.xpose.msra.mxu0 0.0
    %464 = vmatprep.subr.mxu0 0.0
    %465 = vmatpush1.xpose.msra.mxu0 0.0
    %466 = vmatprep.subr.mxu0 0.0
    %467 = vmatpush1.xpose.msra.mxu0 0.0
    %468 = vmatprep.subr.mxu0 0.0
    %469 = vmatpush1.xpose.msra.mxu0 0.0
    %470 = vmatprep.subr.mxu0 0.0
    %471 = vmatpush1.xpose.msra.mxu0 0.0
    %472 = vmatprep.subr.mxu0 0.0
    %473 = vmatpush1.xpose.msra.mxu0 0.0
    %474 = vmatprep.subr.mxu0 0.0
    %475 = vmatpush1.xpose.msra.mxu0 0.0
    %476 = vmatprep.subr.mxu0 0.0
    %477 = vmatpush1.xpose.msra.mxu0 0.0
    %478 = vmatprep.subr.mxu0 0.0
    %479 = vmatpush1.xpose.msra.mxu0 0.0
    %480 = vmatprep.subr.mxu0 0.0
    %481 = vmatpush1.xpose.msra.mxu0 0.0
    %482 = vmatprep.subr.mxu0 0.0
    %483 = vmatpush1.xpose.msra.mxu0 0.0
    %484 = vmatprep.subr.mxu0 0.0
    %485 = vmatpush1.xpose.msra.mxu0 0.0
    %486 = vmatprep.subr.mxu0 0.0
    %487 = vmatpush1.xpose.msra.mxu0 0.0
    %488 = vmatprep.subr.mxu0 0.0
    %489 = vmatpush1.xpose.msra.mxu0 0.0
    %490 = vmatprep.subr.mxu0 0.0
    %491 = vmatpush1.xpose.msra.mxu0 0.0
    %492 = vmatprep.subr.mxu0 0.0
    %493 = vmatpush1.xpose.msra.mxu0 0.0
    %494 = vmatprep.subr.mxu0 0.0
    %495 = vmatpush1.xpose.msra.mxu0 0.0
    %496 = vmatprep.subr.mxu0 0.0
    %497 = vmatpush1.xpose.msra.mxu0 0.0
    %498 = vmatprep.subr.mxu0 0.0
    %499 = vmatpush1.xpose.msra.mxu0 0.0
    %500 = vmatprep.subr.mxu0 0.0
    %501 = vmatpush1.xpose.msra.mxu0 0.0
    %502 = vmatprep.mubr.f32.mxu0 0.0
    %v503 = vand.u32 %v209, 4294901760
    %v504 = vsub.f32 %v209, %v503
    %v505 = vand.u32 %v504, 4294901760
    %506 = vmatmul.mubr.f32.gmra.mrb[0].mxu0 %v505
    %v507 = vpop.f32.mrb[0].mxu0
    %v508 = vadd.f32 %v434, %v507
    %v509 = vpop.f32.mrb[0].mxu0
    %510 = vdwg.mxu0
    %511 = vmatprep.subr.mxu0 0.0
    %v512 = vand.u32 %v210, 4294901760
    %v513 = vsub.f32 %v210, %v512
    %v514 = vand.u32 %v513, 4294901760
    %515 = vmatpush1.xpose.msra.mxu0 %v514
    %516 = vmatprep.subr.mxu0 0.0
    %517 = vmatpush1.xpose.msra.mxu0 0.0
    %518 = vmatprep.subr.mxu0 0.0
    %519 = vmatpush1.xpose.msra.mxu0 0.0
    %520 = vmatprep.subr.mxu0 0.0
    %521 = vmatpush1.xpose.msra.mxu0 0.0
    %522 = vmatprep.subr.mxu0 0.0
    %523 = vmatpush1.xpose.msra.mxu0 0.0
    %524 = vmatprep.subr.mxu0 0.0
    %525 = vmatpush1.xpose.msra.mxu0 0.0
    %526 = vmatprep.subr.mxu0 0.0
    %527 = vmatpush1.xpose.msra.mxu0 0.0
    %528 = vmatprep.subr.mxu0 0.0
    %529 = vmatpush1.xpose.msra.mxu0 0.0
    %530 = vmatprep.subr.mxu0 0.0
    %531 = vmatpush1.xpose.msra.mxu0 0.0
    %532 = vmatprep.subr.mxu0 0.0
    %533 = vmatpush1.xpose.msra.mxu0 0.0
    %534 = vmatprep.subr.mxu0 0.0
    %535 = vmatpush1.xpose.msra.mxu0 0.0
    %536 = vmatprep.subr.mxu0 0.0
    %537 = vmatpush1.xpose.msra.mxu0 0.0
    %538 = vmatprep.subr.mxu0 0.0
    %539 = vmatpush1.xpose.msra.mxu0 0.0
    %540 = vmatprep.subr.mxu0 0.0
    %541 = vmatpush1.xpose.msra.mxu0 0.0
    %542 = vmatprep.subr.mxu0 0.0
    %543 = vmatpush1.xpose.msra.mxu0 0.0
    %544 = vmatprep.subr.mxu0 0.0
    %545 = vmatpush1.xpose.msra.mxu0 0.0
    %546 = vmatprep.subr.mxu0 0.0
    %547 = vmatpush1.xpose.msra.mxu0 0.0
    %548 = vmatprep.subr.mxu0 0.0
    %549 = vmatpush1.xpose.msra.mxu0 0.0
    %550 = vmatprep.subr.mxu0 0.0
    %551 = vmatpush1.xpose.msra.mxu0 0.0
    %552 = vmatprep.subr.mxu0 0.0
    %553 = vmatpush1.xpose.msra.mxu0 0.0
    %554 = vmatprep.subr.mxu0 0.0
    %555 = vmatpush1.xpose.msra.mxu0 0.0
    %556 = vmatprep.subr.mxu0 0.0
    %557 = vmatpush1.xpose.msra.mxu0 0.0
    %558 = vmatprep.subr.mxu0 0.0
    %559 = vmatpush1.xpose.msra.mxu0 0.0
    %560 = vmatprep.subr.mxu0 0.0
    %561 = vmatpush1.xpose.msra.mxu0 0.0
    %562 = vmatprep.subr.mxu0 0.0
    %563 = vmatpush1.xpose.msra.mxu0 0.0
    %564 = vmatprep.subr.mxu0 0.0
    %565 = vmatpush1.xpose.msra.mxu0 0.0
    %566 = vmatprep.subr.mxu0 0.0
    %567 = vmatpush1.xpose.msra.mxu0 0.0
    %568 = vmatprep.subr.mxu0 0.0
    %569 = vmatpush1.xpose.msra.mxu0 0.0
    %570 = vmatprep.subr.mxu0 0.0
    %571 = vmatpush1.xpose.msra.mxu0 0.0
    %572 = vmatprep.subr.mxu0 0.0
    %573 = vmatpush1.xpose.msra.mxu0 0.0
    %574 = vmatprep.subr.mxu0 0.0
    %575 = vmatpush1.xpose.msra.mxu0 0.0
    %576 = vmatprep.subr.mxu0 0.0
    %577 = vmatpush1.xpose.msra.mxu0 0.0
    %578 = vmatprep.mubr.f32.mxu0 0.0
    %v579 = vand.u32 %v209, 4294901760
    %580 = vmatmul.mubr.f32.gmra.mrb[0].mxu0 %v579
    %v581 = vpop.f32.mrb[0].mxu0
    %v582 = vadd.f32 %v508, %v581
    %v583 = vpop.f32.mrb[0].mxu0
    %584 = vdwg.mxu0
    %585 = vmatprep.subr.mxu0 0.0
    %v586 = vand.u32 %v210, 4294901760
    %587 = vmatpush1.xpose.msra.mxu0 %v586
    %588 = vmatprep.subr.mxu0 0.0
    %589 = vmatpush1.xpose.msra.mxu0 0.0
    %590 = vmatprep.subr.mxu0 0.0
    %591 = vmatpush1.xpose.msra.mxu0 0.0
    %592 = vmatprep.subr.mxu0 0.0
    %593 = vmatpush1.xpose.msra.mxu0 0.0
    %594 = vmatprep.subr.mxu0 0.0
    %595 = vmatpush1.xpose.msra.mxu0 0.0
    %596 = vmatprep.subr.mxu0 0.0
    %597 = vmatpush1.xpose.msra.mxu0 0.0
    %598 = vmatprep.subr.mxu0 0.0
    %599 = vmatpush1.xpose.msra.mxu0 0.0
    %600 = vmatprep.subr.mxu0 0.0
    %601 = vmatpush1.xpose.msra.mxu0 0.0
    %602 = vmatprep.subr.mxu0 0.0
    %603 = vmatpush1.xpose.msra.mxu0 0.0
    %604 = vmatprep.subr.mxu0 0.0
    %605 = vmatpush1.xpose.msra.mxu0 0.0
    %606 = vmatprep.subr.mxu0 0.0
    %607 = vmatpush1.xpose.msra.mxu0 0.0
    %608 = vmatprep.subr.mxu0 0.0
    %609 = vmatpush1.xpose.msra.mxu0 0.0
    %610 = vmatprep.subr.mxu0 0.0
    %611 = vmatpush1.xpose.msra.mxu0 0.0
    %612 = vmatprep.subr.mxu0 0.0
    %613 = vmatpush1.xpose.msra.mxu0 0.0
    %614 = vmatprep.subr.mxu0 0.0
    %615 = vmatpush1.xpose.msra.mxu0 0.0
    %616 = vmatprep.subr.mxu0 0.0
    %617 = vmatpush1.xpose.msra.mxu0 0.0
    %618 = vmatprep.subr.mxu0 0.0
    %619 = vmatpush1.xpose.msra.mxu0 0.0
    %620 = vmatprep.subr.mxu0 0.0
    %621 = vmatpush1.xpose.msra.mxu0 0.0
    %622 = vmatprep.subr.mxu0 0.0
    %623 = vmatpush1.xpose.msra.mxu0 0.0
    %624 = vmatprep.subr.mxu0 0.0
    %625 = vmatpush1.xpose.msra.mxu0 0.0
    %626 = vmatprep.subr.mxu0 0.0
    %627 = vmatpush1.xpose.msra.mxu0 0.0
    %628 = vmatprep.subr.mxu0 0.0
    %629 = vmatpush1.xpose.msra.mxu0 0.0
    %630 = vmatprep.subr.mxu0 0.0
    %631 = vmatpush1.xpose.msra.mxu0 0.0
    %632 = vmatprep.subr.mxu0 0.0
    %633 = vmatpush1.xpose.msra.mxu0 0.0
    %634 = vmatprep.subr.mxu0 0.0
    %635 = vmatpush1.xpose.msra.mxu0 0.0
    %636 = vmatprep.subr.mxu0 0.0
    %637 = vmatpush1.xpose.msra.mxu0 0.0
    %638 = vmatprep.subr.mxu0 0.0
    %639 = vmatpush1.xpose.msra.mxu0 0.0
    %640 = vmatprep.subr.mxu0 0.0
    %641 = vmatpush1.xpose.msra.mxu0 0.0
    %642 = vmatprep.subr.mxu0 0.0
    %643 = vmatpush1.xpose.msra.mxu0 0.0
    %644 = vmatprep.subr.mxu0 0.0
    %645 = vmatpush1.xpose.msra.mxu0 0.0
    %646 = vmatprep.subr.mxu0 0.0
    %647 = vmatpush1.xpose.msra.mxu0 0.0
    %648 = vmatprep.subr.mxu0 0.0
    %649 = vmatpush1.xpose.msra.mxu0 0.0
    %650 = vmatprep.mubr.f32.mxu0 0.0
    %v651 = vand.u32 %v209, 4294901760
    %652 = vmatmul.mubr.f32.gmra.mrb[0].mxu0 %v651
    %v653 = vpop.f32.mrb[0].mxu0
    %v654 = vadd.f32 %v582, %v653
    %v655 = vpop.f32.mrb[0].mxu0
    %656 = vdwg.mxu0
    %v657 = vmul.f32 %v654, 0.001953125
    %v658 = vmul.f32 %v657, %v657
    %v660 = vrot.slane %v658, 7
    %v662 = vsub.f32 %v657, %v660
    %v663 = vadd.f32 %v662, 1e-05
    %v664 = vrsqrt.pop %v663
    %v665 = vld [vmem:[%s3] sm:$0x1]
    %v667 = vrot.slane %v665, 7
    %v669 = vmul.f32 %v664, %v667
    %vm670 = vcmask 58369
    %671 = vst.msk [vmem:[#allocation3 - $0x1] sm:$0x2] %vm670, %v669
    %v672 = vld [vmem:[%s3 + $0x1] sm:$0x1]
    %v674 = vrot.slane %v669, 1
    %v676 = vmul.f32 %v657, %v674
    %v677 = vsub.f32 %v672, %v676
    %vm678 = vcmask 57344
    %679 = vst.msk [vmem:[#allocation3 + $0x1] sm:$0x1] %vm678, %v677
    %v680 = vld [vmem:[#allocation3] sm:$0x3]
    %v681 = vld [vmem:[%s5] sm:$0xff]
    %vm682 = vcmask 64512
    %v684 = vsel %vm682, %v680, 0
    %686 = vmatprep.subr.mxu0 0.0
    %v687 = vand.u32 %v681, 4294901760
    %688 = vmatpush1.msra.mxu0 %v687
    %689 = vmatprep.subr.mxu0 0.0
    %690 = vmatpush1.msra.mxu0 0.0
    %691 = vmatprep.subr.mxu0 0.0
    %692 = vmatpush1.msra.mxu0 0.0
    %693 = vmatprep.subr.mxu0 0.0
    %694 = vmatpush1.msra.mxu0 0.0
    %695 = vmatprep.subr.mxu0 0.0
    %696 = vmatpush1.msra.mxu0 0.0
    %697 = vmatprep.subr.mxu0 0.0
    %698 = vmatpush1.msra.mxu0 0.0
    %699 = vmatprep.subr.mxu0 0.0
    %700 = vmatpush1.msra.mxu0 0.0
    %701 = vmatprep.subr.mxu0 0.0
    %702 = vmatpush1.msra.mxu0 0.0
    %703 = vmatprep.subr.mxu0 0.0
    %704 = vmatpush1.msra.mxu0 0.0
    %705 = vmatprep.subr.mxu0 0.0
    %706 = vmatpush1.msra.mxu0 0.0
    %707 = vmatprep.subr.mxu0 0.0
    %708 = vmatpush1.msra.mxu0 0.0
    %709 = vmatprep.subr.mxu0 0.0
    %710 = vmatpush1.msra.mxu0 0.0
    %711 = vmatprep.subr.mxu0 0.0
    %712 = vmatpush1.msra.mxu0 0.0
    %713 = vmatprep.subr.mxu0 0.0
    %714 = vmatpush1.msra.mxu0 0.0
    %715 = vmatprep.subr.mxu0 0.0
    %716 = vmatpush1.msra.mxu0 0.0
    %717 = vmatprep.subr.mxu0 0.0
    %718 = vmatpush1.msra.mxu0 0.0
    %719 = vmatprep.subr.mxu0 0.0
    %720 = vmatpush1.msra.mxu0 0.0
    %721 = vmatprep.subr.mxu0 0.0
    %722 = vmatpush1.msra.mxu0 0.0
    %723 = vmatprep.subr.mxu0 0.0
    %724 = vmatpush1.msra.mxu0 0.0
    %725 = vmatprep.subr.mxu0 0.0
    %726 = vmatpush1.msra.mxu0 0.0
    %727 = vmatprep.subr.mxu0 0.0
    %728 = vmatpush1.msra.mxu0 0.0
    %729 = vmatprep.subr.mxu0 0.0
    %730 = vmatpush1.msra.mxu0 0.0
    %731 = vmatprep.subr.mxu0 0.0
    %732 = vmatpush1.msra.mxu0 0.0
    %733 = vmatprep.subr.mxu0 0.0
    %734 = vmatpush1.msra.mxu0 0.0
    %735 = vmatprep.subr.mxu0 0.0
    %736 = vmatpush1.msra.mxu0 0.0
    %737 = vmatprep.subr.mxu0 0.0
    %738 = vmatpush1.msra.mxu0 0.0
    %739 = vmatprep.subr.mxu0 0.0
    %740 = vmatpush1.msra.mxu0 0.0
    %741 = vmatprep.subr.mxu0 0.0
    %742 = vmatpush1.msra.mxu0 0.0
    %743 = vmatprep.subr.mxu0 0.0
    %744 = vmatpush1.msra.mxu0 0.0
    %745 = vmatprep.subr.mxu0 0.0
    %746 = vmatpush1.msra.mxu0 0.0
    %747 = vmatprep.subr.mxu0 0.0
    %748 = vmatpush1.msra.mxu0 0.0
    %749 = vmatprep.subr.mxu0 0.0
    %750 = vmatpush1.msra.mxu0 0.0
    %751 = vmatprep.mubr.f32.mxu0 0.0
    %v752 = vand.u32 %v684, 4294901760
    %v753 = vsub.f32 %v684, %v752
    %v754 = vand.u32 %v753, 4294901760
    %v755 = vsub.f32 %v753, %v754
    %v756 = vand.u32 %v755, 4294901760
    %757 = vmatmul.mubr.f32.gmra.mrb[0].mxu0 %v756
    %v758 = vpop.f32.mrb[0].mxu0
    %v759 = vadd.f32 0.0, %v758
    %v760 = vpop.f32.mrb[0].mxu0
    %761 = vdwg.mxu0
    %762 = vmatprep.subr.mxu0 0.0
    %v763 = vand.u32 %v681, 4294901760
    %v764 = vsub.f32 %v681, %v763
    %v765 = vand.u32 %v764, 4294901760
    %v766 = vsub.f32 %v764, %v765
    %v767 = vand.u32 %v766, 4294901760
    %768 = vmatpush1.msra.mxu0 %v767
    %769 = vmatprep.subr.mxu0 0.0
    %770 = vmatpush1.msra.mxu0 0.0
    %771 = vmatprep.subr.mxu0 0.0
    %772 = vmatpush1.msra.mxu0 0.0
    %773 = vmatprep.subr.mxu0 0.0
    %774 = vmatpush1.msra.mxu0 0.0
    %775 = vmatprep.subr.mxu0 0.0
    %776 = vmatpush1.msra.mxu0 0.0
    %777 = vmatprep.subr.mxu0 0.0
    %778 = vmatpush1.msra.mxu0 0.0
    %779 = vmatprep.subr.mxu0 0.0
    %780 = vmatpush1.msra.mxu0 0.0
    %781 = vmatprep.subr.mxu0 0.0
    %782 = vmatpush1.msra.mxu0 0.0
    %783 = vmatprep.subr.mxu0 0.0
    %784 = vmatpush1.msra.mxu0 0.0
    %785 = vmatprep.subr.mxu0 0.0
    %786 = vmatpush1.msra.mxu0 0.0
    %787 = vmatprep.subr.mxu0 0.0
    %788 = vmatpush1.msra.mxu0 0.0
    %789 = vmatprep.subr.mxu0 0.0
    %790 = vmatpush1.msra.mxu0 0.0
    %791 = vmatprep.subr.mxu0 0.0
    %792 = vmatpush1.msra.mxu0 0.0
    %793 = vmatprep.subr.mxu0 0.0
    %794 = vmatpush1.msra.mxu0 0.0
    %795 = vmatprep.subr.mxu0 0.0
    %796 = vmatpush1.msra.mxu0 0.0
    %797 = vmatprep.subr.mxu0 0.0
    %798 = vmatpush1.msra.mxu0 0.0
    %799 = vmatprep.subr.mxu0 0.0
    %800 = vmatpush1.msra.mxu0 0.0
    %801 = vmatprep.subr.mxu0 0.0
    %802 = vmatpush1.msra.mxu0 0.0
    %803 = vmatprep.subr.mxu0 0.0
    %804 = vmatpush1.msra.mxu0 0.0
    %805 = vmatprep.subr.mxu0 0.0
    %806 = vmatpush1.msra.mxu0 0.0
    %807 = vmatprep.subr.mxu0 0.0
    %808 = vmatpush1.msra.mxu0 0.0
    %809 = vmatprep.subr.mxu0 0.0
    %810 = vmatpush1.msra.mxu0 0.0
    %811 = vmatprep.subr.mxu0 0.0
    %812 = vmatpush1.msra.mxu0 0.0
    %813 = vmatprep.subr.mxu0 0.0
    %814 = vmatpush1.msra.mxu0 0.0
    %815 = vmatprep.subr.mxu0 0.0
    %816 = vmatpush1.msra.mxu0 0.0
    %817 = vmatprep.subr.mxu0 0.0
    %818 = vmatpush1.msra.mxu0 0.0
    %819 = vmatprep.subr.mxu0 0.0
    %820 = vmatpush1.msra.mxu0 0.0
    %821 = vmatprep.subr.mxu0 0.0
    %822 = vmatpush1.msra.mxu0 0.0
    %823 = vmatprep.subr.mxu0 0.0
    %824 = vmatpush1.msra.mxu0 0.0
    %825 = vmatprep.subr.mxu0 0.0
    %826 = vmatpush1.msra.mxu0 0.0
    %827 = vmatprep.subr.mxu0 0.0
    %828 = vmatpush1.msra.mxu0 0.0
    %829 = vmatprep.subr.mxu0 0.0
    %830 = vmatpush1.msra.mxu0 0.0
    %831 = vmatprep.mubr.f32.mxu0 0.0
    %v832 = vand.u32 %v684, 4294901760
    %833 = vmatmul.mubr.f32.gmra.mrb[0].mxu0 %v832
    %v834 = vpop.f32.mrb[0].mxu0
    %v835 = vadd.f32 %v759, %v834
    %v836 = vpop.f32.mrb[0].mxu0
    %837 = vdwg.mxu0
    %838 = vmatprep.subr.mxu0 0.0
    %v839 = vand.u32 %v681, 4294901760
    %v840 = vsub.f32 %v681, %v839
    %841 = vmatpush1.msra.mxu0 %v840
    %842 = vmatprep.subr.mxu0 0.0
    %843 = vmatpush1.msra.mxu0 0.0
    %844 = vmatprep.subr.mxu0 0.0
    %845 = vmatpush1.msra.mxu0 0.0
    %846 = vmatprep.subr.mxu0 0.0
    %847 = vmatpush1.msra.mxu0 0.0
    %848 = vmatprep.subr.mxu0 0.0
    %849 = vmatpush1.msra.mxu0 0.0
    %850 = vmatprep.subr.mxu0 0.0
    %851 = vmatpush1.msra.mxu0 0.0
    %852 = vmatprep.subr.mxu0 0.0
    %853 = vmatpush1.msra.mxu0 0.0
    %854 = vmatprep.subr.mxu0 0.0
    %855 = vmatpush1.msra.mxu0 0.0
    %856 = vmatprep.subr.mxu0 0.0
    %857 = vmatpush1.msra.mxu0 0.0
    %858 = vmatprep.subr.mxu0 0.0
    %859 = vmatpush1.msra.mxu0 0.0
    %860 = vmatprep.subr.mxu0 0.0
    %861 = vmatpush1.msra.mxu0 0.0
    %862 = vmatprep.subr.mxu0 0.0
    %863 = vmatpush1.msra.mxu0 0.0
    %864 = vmatprep.subr.mxu0 0.0
    %865 = vmatpush1.msra.mxu0 0.0
    %866 = vmatprep.subr.mxu0 0.0
    %867 = vmatpush1.msra.mxu0 0.0
    %868 = vmatprep.subr.mxu0 0.0
    %869 = vmatpush1.msra.mxu0 0.0
    %870 = vmatprep.subr.mxu0 0.0
    %871 = vmatpush1.msra.mxu0 0.0
    %872 = vmatprep.subr.mxu0 0.0
    %873 = vmatpush1.msra.mxu0 0.0
    %874 = vmatprep.subr.mxu0 0.0
    %875 = vmatpush1.msra.mxu0 0.0
    %876 = vmatprep.subr.mxu0 0.0
    %877 = vmatpush1.msra.mxu0 0.0
    %878 = vmatprep.subr.mxu0 0.0
    %879 = vmatpush1.msra.mxu0 0.0
    %880 = vmatprep.subr.mxu0 0.0
    %881 = vmatpush1.msra.mxu0 0.0
    %882 = vmatprep.subr.mxu0 0.0
    %883 = vmatpush1.msra.mxu0 0.0
    %884 = vmatprep.subr.mxu0 0.0
    %885 = vmatpush1.msra.mxu0 0.0
    %886 = vmatprep.subr.mxu0 0.0
    %887 = vmatpush1.msra.mxu0 0.0
    %888 = vmatprep.subr.mxu0 0.0
    %889 = vmatpush1.msra.mxu0 0.0
    %890 = vmatprep.subr.mxu0 0.0
    %891 = vmatpush1.msra.mxu0 0.0
    %892 = vmatprep.subr.mxu0 0.0
    %893 = vmatpush1.msra.mxu0 0.0
    %894 = vmatprep.subr.mxu0 0.0
    %895 = vmatpush1.msra.mxu0 0.0
    %896 = vmatprep.subr.mxu0 0.0
    %897 = vmatpush1.msra.mxu0 0.0
    %898 = vmatprep.subr.mxu0 0.0
    %899 = vmatpush1.msra.mxu0 0.0
    %900 = vmatprep.subr.mxu0 0.0
    %901 = vmatpush1.msra.mxu0 0.0
    %902 = vmatprep.subr.mxu0 0.0
    %903 = vmatpush1.msra.mxu0 0.0
    %904 = vmatprep.mubr.f32.mxu0 0.0
    %v905 = vand.u32 %v684, 4294901760
    %v906 = vsub.f32 %v684, %v905
    %907 = vmatmul.mubr.f32.gmra.mrb[0].mxu0 %v906
    %v908 = vpop.f32.mrb[0].mxu0
    %v909 = vadd.f32 %v835, %v908
    %v910 = vpop.f32.mrb[0].mxu0
    %911 = vdwg.mxu0
    %912 = vmatprep.subr.mxu0 0.0
    %v913 = vand.u32 %v681, 4294901760
    %914 = vmatpush1.msra.mxu0 %v913
    %915 = vmatprep.subr.mxu0 0.0
    %916 = vmatpush1.msra.mxu0 0.0
    %917 = vmatprep.subr.mxu0 0.0
    %918 = vmatpush1.msra.mxu0 0.0
    %919 = vmatprep.subr.mxu0 0.0
    %920 = vmatpush1.msra.mxu0 0.0
    %921 = vmatprep.subr.mxu0 0.0
    %922 = vmatpush1.msra.mxu0 0.0
    %923 = vmatprep.subr.mxu0 0.0
    %924 = vmatpush1.msra.mxu0 0.0
    %925 = vmatprep.subr.mxu0 0.0
    %926 = vmatpush1.msra.mxu0 0.0
    %927 = vmatprep.subr.mxu0 0.0
    %928 = vmatpush1.msra.mxu0 0.0
    %929 = vmatprep.subr.mxu0 0.0
    %930 = vmatpush1.msra.mxu0 0.0
    %931 = vmatprep.subr.mxu0 0.0
    %932 = vmatpush1.msra.mxu0 0.0
    %933 = vmatprep.subr.mxu0 0.0
    %934 = vmatpush1.msra.mxu0 0.0
    %935 = vmatprep.subr.mxu0 0.0
    %936 = vmatpush1.msra.mxu0 0.0
    %937 = vmatprep.subr.mxu0 0.0
    %938 = vmatpush1.msra.mxu0 0.0
    %939 = vmatprep.subr.mxu0 0.0
    %940 = vmatpush1.msra.mxu0 0.0
    %941 = vmatprep.subr.mxu0 0.0
    %942 = vmatpush1.msra.mxu0 0.0
    %943 = vmatprep.subr.mxu0 0.0
    %944 = vmatpush1.msra.mxu0 0.0
    %945 = vmatprep.subr.mxu0 0.0
    %946 = vmatpush1.msra.mxu0 0.0
    %947 = vmatprep.subr.mxu0 0.0
    %948 = vmatpush1.msra.mxu0 0.0
    %949 = vmatprep.subr.mxu0 0.0
    %950 = vmatpush1.msra.mxu0 0.0
    %951 = vmatprep.subr.mxu0 0.0
    %952 = vmatpush1.msra.mxu0 0.0
    %953 = vmatprep.subr.mxu0 0.0
    %954 = vmatpush1.msra.mxu0 0.0
    %955 = vmatprep.subr.mxu0 0.0
    %956 = vmatpush1.msra.mxu0 0.0
    %957 = vmatprep.subr.mxu0 0.0
    %958 = vmatpush1.msra.mxu0 0.0
    %959 = vmatprep.subr.mxu0 0.0
    %960 = vmatpush1.msra.mxu0 0.0
    %961 = vmatprep.subr.mxu0 0.0
    %962 = vmatpush1.msra.mxu0 0.0
    %963 = vmatprep.subr.mxu0 0.0
    %964 = vmatpush1.msra.mxu0 0.0
    %965 = vmatprep.subr.mxu0 0.0
    %966 = vmatpush1.msra.mxu0 0.0
    %967 = vmatprep.subr.mxu0 0.0
    %968 = vmatpush1.msra.mxu0 0.0
    %969 = vmatprep.subr.mxu0 0.0
    %970 = vmatpush1.msra.mxu0 0.0
    %971 = vmatprep.subr.mxu0 0.0
    %972 = vmatpush1.msra.mxu0 0.0
    %973 = vmatprep.subr.mxu0 0.0
    %974 = vmatpush1.msra.mxu0 0.0
    %975 = vmatprep.subr.mxu0 0.0
    %976 = vmatpush1.msra.mxu0 0.0
    %977 = vmatprep.mubr.f32.mxu0 0.0
    %v978 = vand.u32 %v684, 4294901760
    %v979 = vsub.f32 %v684, %v978
    %v980 = vand.u32 %v979, 4294901760
    %981 = vmatmul.mubr.f32.gmra.mrb[0].mxu0 %v980
    %v982 = vpop.f32.mrb[0].mxu0
    %v983 = vadd.f32 %v909, %v982
    %v984 = vpop.f32.mrb[0].mxu0
    %985 = vdwg.mxu0
    %986 = vmatprep.subr.mxu0 0.0
    %v987 = vand.u32 %v681, 4294901760
    %v988 = vsub.f32 %v681, %v987
    %v989 = vand.u32 %v988, 4294901760
    %990 = vmatpush1.msra.mxu0 %v989
    %991 = vmatprep.subr.mxu0 0.0
    %992 = vmatpush1.msra.mxu0 0.0
    %993 = vmatprep.subr.mxu0 0.0
    %994 = vmatpush1.msra.mxu0 0.0
    %995 = vmatprep.subr.mxu0 0.0
    %996 = vmatpush1.msra.mxu0 0.0
    %997 = vmatprep.subr.mxu0 0.0
    %998 = vmatpush1.msra.mxu0 0.0
    %999 = vmatprep.subr.mxu0 0.0
    %1000 = vmatpush1.msra.mxu0 0.0
    %1001 = vmatprep.subr.mxu0 0.0
    %1002 = vmatpush1.msra.mxu0 0.0
    %1003 = vmatprep.subr.mxu0 0.0
    %1004 = vmatpush1.msra.mxu0 0.0
    %1005 = vmatprep.subr.mxu0 0.0
    %1006 = vmatpush1.msra.mxu0 0.0
    %1007 = vmatprep.subr.mxu0 0.0
    %1008 = vmatpush1.msra.mxu0 0.0
    %1009 = vmatprep.subr.mxu0 0.0
    %1010 = vmatpush1.msra.mxu0 0.0
    %1011 = vmatprep.subr.mxu0 0.0
    %1012 = vmatpush1.msra.mxu0 0.0
    %1013 = vmatprep.subr.mxu0 0.0
    %1014 = vmatpush1.msra.mxu0 0.0
    %1015 = vmatprep.subr.mxu0 0.0
    %1016 = vmatpush1.msra.mxu0 0.0
    %1017 = vmatprep.subr.mxu0 0.0
    %1018 = vmatpush1.msra.mxu0 0.0
    %1019 = vmatprep.subr.mxu0 0.0
    %1020 = vmatpush1.msra.mxu0 0.0
    %1021 = vmatprep.subr.mxu0 0.0
    %1022 = vmatpush1.msra.mxu0 0.0
    %1023 = vmatprep.subr.mxu0 0.0
    %1024 = vmatpush1.msra.mxu0 0.0
    %1025 = vmatprep.subr.mxu0 0.0
    %1026 = vmatpush1.msra.mxu0 0.0
    %1027 = vmatprep.subr.mxu0 0.0
    %1028 = vmatpush1.msra.mxu0 0.0
    %1029 = vmatprep.subr.mxu0 0.0
    %1030 = vmatpush1.msra.mxu0 0.0
    %1031 = vmatprep.subr.mxu0 0.0
    %1032 = vmatpush1.msra.mxu0 0.0
    %1033 = vmatprep.subr.mxu0 0.0
    %1034 = vmatpush1.msra.mxu0 0.0
    %1035 = vmatprep.subr.mxu0 0.0
    %1036 = vmatpush1.msra.mxu0 0.0
    %1037 = vmatprep.subr.mxu0 0.0
    %1038 = vmatpush1.msra.mxu0 0.0
    %1039 = vmatprep.subr.mxu0 0.0
    %1040 = vmatpush1.msra.mxu0 0.0
    %1041 = vmatprep.subr.mxu0 0.0
    %1042 = vmatpush1.msra.mxu0 0.0
    %1043 = vmatprep.subr.mxu0 0.0
    %1044 = vmatpush1.msra.mxu0 0.0
    %1045 = vmatprep.subr.mxu0 0.0
    %1046 = vmatpush1.msra.mxu0 0.0
    %1047 = vmatprep.subr.mxu0 0.0
    %1048 = vmatpush1.msra.mxu0 0.0
    %1049 = vmatprep.subr.mxu0 0.0
    %1050 = vmatpush1.msra.mxu0 0.0
    %1051 = vmatprep.subr.mxu0 0.0
    %1052 = vmatpush1.msra.mxu0 0.0
    %1053 = vmatprep.mubr.f32.mxu0 0.0
    %v1054 = vand.u32 %v684, 4294901760
    %1055 = vmatmul.mubr.f32.gmra.mrb[0].mxu0 %v1054
    %v1056 = vpop.f32.mrb[0].mxu0
    %v1057 = vadd.f32 %v983, %v1056
    %v1058 = vpop.f32.mrb[0].mxu0
    %1059 = vdwg.mxu0
    %1060 = vmatprep.subr.mxu0 0.0
    %v1061 = vand.u32 %v681, 4294901760
    %1062 = vmatpush1.msra.mxu0 %v1061
    %1063 = vmatprep.subr.mxu0 0.0
    %1064 = vmatpush1.msra.mxu0 0.0
    %1065 = vmatprep.subr.mxu0 0.0
    %1066 = vmatpush1.msra.mxu0 0.0
    %1067 = vmatprep.subr.mxu0 0.0
    %1068 = vmatpush1.msra.mxu0 0.0
    %1069 = vmatprep.subr.mxu0 0.0
    %1070 = vmatpush1.msra.mxu0 0.0
    %1071 = vmatprep.subr.mxu0 0.0
    %1072 = vmatpush1.msra.mxu0 0.0
    %1073 = vmatprep.subr.mxu0 0.0
    %1074 = vmatpush1.msra.mxu0 0.0
    %1075 = vmatprep.subr.mxu0 0.0
    %1076 = vmatpush1.msra.mxu0 0.0
    %1077 = vmatprep.subr.mxu0 0.0
    %1078 = vmatpush1.msra.mxu0 0.0
    %1079 = vmatprep.subr.mxu0 0.0
    %1080 = vmatpush1.msra.mxu0 0.0
    %1081 = vmatprep.subr.mxu0 0.0
    %1082 = vmatpush1.msra.mxu0 0.0
    %1083 = vmatprep.subr.mxu0 0.0
    %1084 = vmatpush1.msra.mxu0 0.0
    %1085 = vmatprep.subr.mxu0 0.0
    %1086 = vmatpush1.msra.mxu0 0.0
    %1087 = vmatprep.subr.mxu0 0.0
    %1088 = vmatpush1.msra.mxu0 0.0
    %1089 = vmatprep.subr.mxu0 0.0
    %1090 = vmatpush1.msra.mxu0 0.0
    %1091 = vmatprep.subr.mxu0 0.0
    %1092 = vmatpush1.msra.mxu0 0.0
    %1093 = vmatprep.subr.mxu0 0.0
    %1094 = vmatpush1.msra.mxu0 0.0
    %1095 = vmatprep.subr.mxu0 0.0
    %1096 = vmatpush1.msra.mxu0 0.0
    %1097 = vmatprep.subr.mxu0 0.0
    %1098 = vmatpush1.msra.mxu0 0.0
    %1099 = vmatprep.subr.mxu0 0.0
    %1100 = vmatpush1.msra.mxu0 0.0
    %1101 = vmatprep.subr.mxu0 0.0
    %1102 = vmatpush1.msra.mxu0 0.0
    %1103 = vmatprep.subr.mxu0 0.0
    %1104 = vmatpush1.msra.mxu0 0.0
    %1105 = vmatprep.subr.mxu0 0.0
    %1106 = vmatpush1.msra.mxu0 0.0
    %1107 = vmatprep.subr.mxu0 0.0
    %1108 = vmatpush1.msra.mxu0 0.0
    %1109 = vmatprep.subr.mxu0 0.0
    %1110 = vmatpush1.msra.mxu0 0.0
    %1111 = vmatprep.subr.mxu0 0.0
    %1112 = vmatpush1.msra.mxu0 0.0
    %1113 = vmatprep.subr.mxu0 0.0
    %1114 = vmatpush1.msra.mxu0 0.0
    %1115 = vmatprep.subr.mxu0 0.0
    %1116 = vmatpush1.msra.mxu0 0.0
    %1117 = vmatprep.subr.mxu0 0.0
    %1118 = vmatpush1.msra.mxu0 0.0
    %1119 = vmatprep.subr.mxu0 0.0
    %1120 = vmatpush1.msra.mxu0 0.0
    %1121 = vmatprep.subr.mxu0 0.0
    %1122 = vmatpush1.msra.mxu0 0.0
    %1123 = vmatprep.subr.mxu0 0.0
    %1124 = vmatpush1.msra.mxu0 0.0
    %1125 = vmatprep.mubr.f32.mxu0 0.0
    %v1126 = vand.u32 %v684, 4294901760
    %1127 = vmatmul.mubr.f32.gmra.mrb[0].mxu0 %v1126
    %v1128 = vpop.f32.mrb[0].mxu0
    %v1129 = vadd.f32 %v1057, %v1128
    %v1130 = vpop.f32.mrb[0].mxu0
    %1131 = vdwg.mxu0
    %v1132 = vlaneseq
    %v1133 = vshrl.u32 %v1132, 7
    %v1134 = vsub.s32 0, %v1133
    %v1135 = vrot.slane %v1129, %v1134
    %v1136 = vmul.f32 %v167, %v1135
    %v1137 = vmul.f32 %v172, %v1135
    %v1138 = vmul.f32 %v177, %v1135
    %v1139 = vmul.f32 %v182, %v1135
    %v1140 = vlaneseq
    %v1141 = vshrl.u32 %v1140, 7
    %v1142 = vsub.s32 1, %v1141
    %v1143 = vrot.slane %v1129, %v1142
    %v1144 = vadd.f32 %v1136, %v1143
    %v1145 = vadd.f32 %v1137, %v1143
    %v1146 = vadd.f32 %v1138, %v1143
    %v1147 = vadd.f32 %v1139, %v1143
    %v1148 = vmul.f32 %v1144, 0.01
    %v1149 = vmul.f32 %v1145, 0.01
    %v1150 = vmul.f32 %v1146, 0.01
    %v1151 = vmul.f32 %v1147, 0.01
    %v1152 = vmax.f32 %v1144, %v1148
    %v1153 = vmax.f32 %v1145, %v1149
    %v1154 = vmax.f32 %v1146, %v1150
    %v1155 = vmax.f32 %v1147, %v1151
    %v1156 = vlaneseq
    %v1157 = vshrl.u32 %v1156, 7
    %v1158 = vadd.s32 %v1157, 8
    %v1159 = vadd.s32 %v1157, 16
    %v1160 = vadd.s32 %v1157, 24
    %vm1161 = vcmp.lt.s32.totalorder %v1157, 0
    %v1162 = vsub.s32 0, %v1157
    %v1163 = vsel %vm1161, %v1162, %v1157
    %v1164 = vshrl.u32 %v1163, 4
    %v1165 = vand.u32 %v1163, 15
    %v1166 = vsub.s32 0, %v1165
    %v1167 = vsel %vm1161, %v1166, %v1165
    %vm1168 = vcmp.lt.s32.totalorder %v1158, 0
    %v1169 = vsub.s32 0, %v1158
    %v1170 = vsel %vm1168, %v1169, %v1158
    %v1171 = vshrl.u32 %v1170, 4
    %v1172 = vand.u32 %v1170, 15
    %v1173 = vsub.s32 0, %v1172
    %v1174 = vsel %vm1168, %v1173, %v1172
    %vm1175 = vcmp.lt.s32.totalorder %v1159, 0
    %v1176 = vsub.s32 0, %v1159
    %v1177 = vsel %vm1175, %v1176, %v1159
    %v1178 = vshrl.u32 %v1177, 4
    %v1179 = vand.u32 %v1177, 15
    %v1180 = vsub.s32 0, %v1179
    %v1181 = vsel %vm1175, %v1180, %v1179
    %vm1182 = vcmp.lt.s32.totalorder %v1160, 0
    %v1183 = vsub.s32 0, %v1160
    %v1184 = vsel %vm1182, %v1183, %v1160
    %v1185 = vshrl.u32 %v1184, 4
    %v1186 = vand.u32 %v1184, 15
    %v1187 = vsub.s32 0, %v1186
    %v1188 = vsel %vm1182, %v1187, %v1186
    %vm1189 = vcmp.ne.s32.totalorder %v1167, 0
    %vm1190 = vcmp.ne.s32.totalorder %v1174, 0
    %vm1191 = vcmp.ne.s32.totalorder %v1181, 0
    %vm1192 = vcmp.ne.s32.totalorder %v1188, 0
    %vm1193 = vcmp.lt.s32.totalorder %v1167, 0
    %vm1194 = vcmp.lt.s32.totalorder %v1174, 0
    %vm1195 = vcmp.lt.s32.totalorder %v1181, 0
    %vm1196 = vcmp.lt.s32.totalorder %v1188, 0
    %vm1197 = vmand %vm1193, %vm1189
    %vm1198 = vmand %vm1194, %vm1190
    %vm1199 = vmand %vm1195, %vm1191
    %vm1200 = vmand %vm1196, %vm1192
    %v1201 = vadd.s32 %v1167, 16
    %v1202 = vadd.s32 %v1174, 16
    %v1203 = vadd.s32 %v1181, 16
    %v1204 = vadd.s32 %v1188, 16
    %v1205 = vsel %vm1197, %v1201, %v1167
    %v1206 = vsel %vm1198, %v1202, %v1174
    %v1207 = vsel %vm1199, %v1203, %v1181
    %v1208 = vsel %vm1200, %v1204, %v1188
    %vm1209 = vcmp.gt.s32.totalorder %v1205, 0
    %vm1210 = vcmp.gt.s32.totalorder %v1206, 0
    %vm1211 = vcmp.gt.s32.totalorder %v1207, 0
    %vm1212 = vcmp.gt.s32.totalorder %v1208, 0
    %v1213 = vrot.slane %v1152, 7
    %v1214 = vrot.slane %v1153, 7
    %v1215 = vrot.slane %v1154, 7
    %v1216 = vrot.slane %v1155, 7
    %vm1217 = vcmp.lt.s32.totalorder %v1157, 1
    %v1218 = vsel %vm1217, %v1215, %v1216
    %v1219 = vsel %vm1217, %v1214, %v1215
    %v1220 = vsel %vm1217, %v1213, %v1214
    %v1221 = vsel %vm1217, %v1216, %v1213
    %v1222 = vsel %vm1209, 1, 0
    %v1223 = vsel %vm1210, 1, 0
    %v1224 = vsel %vm1211, 1, 0
    %v1225 = vsel %vm1212, 1, 0
    %vm1226 = vcmp.eq.s32.totalorder %v1222, 1
    %vm1227 = vcmp.eq.s32.totalorder %v1223, 1
    %vm1228 = vcmp.eq.s32.totalorder %v1224, 1
    %vm1229 = vcmp.eq.s32.totalorder %v1225, 1
    %v1230 = vsel %vm1226, %v1221, 0.0
    %v1231 = vsel %vm1227, %v1220, 0.0
    %v1232 = vsel %vm1228, %v1219, 0.0
    %v1233 = vsel %vm1229, %v1218, 0.0
    %vm1234 = vcmp.lt.s32.totalorder %v1205, 15
    %vm1235 = vcmp.lt.s32.totalorder %v1206, 15
    %vm1236 = vcmp.lt.s32.totalorder %v1207, 15
    %vm1237 = vcmp.lt.s32.totalorder %v1208, 15
    %v1238 = vrot.slane %v1152, 1
    %v1239 = vrot.slane %v1153, 1
    %v1240 = vrot.slane %v1154, 1
    %v1241 = vrot.slane %v1155, 1
    %vm1242 = vcmp.lt.s32.totalorder %v1157, 7
    %v1243 = vsel %vm1242, %v1240, %v1241
    %v1244 = vsel %vm1242, %v1239, %v1240
    %v1245 = vsel %vm1242, %v1238, %v1239
    %v1246 = vsel %vm1242, %v1241, %v1238
    %v1247 = vsel %vm1234, 1, 0
    %v1248 = vsel %vm1235, 1, 0
    %v1249 = vsel %vm1236, 1, 0
    %v1250 = vsel %vm1237, 1, 0
    %vm1251 = vcmp.eq.s32.totalorder %v1247, 1
    %vm1252 = vcmp.eq.s32.totalorder %v1248, 1
    %vm1253 = vcmp.eq.s32.totalorder %v1249, 1
    %vm1254 = vcmp.eq.s32.totalorder %v1250, 1
    %v1255 = vsel %vm1251, %v1245, 0.0
    %v1256 = vsel %vm1252, %v1244, 0.0
    %v1257 = vsel %vm1253, %v1243, 0.0
    %v1258 = vsel %vm1254, %v1246, 0.0
    %v1259 = vld [vmem:[#allocation11] sm:$0xff]
    %v1260 = vld [vmem:[#allocation11 + $0x8] sm:$0xff]
    %v1261 = vld [vmem:[#allocation11 + $0x10] sm:$0xff]
    %v1262 = vld [vmem:[#allocation11 + $0x18] sm:$0xff]
    %v1263 = vld [vmem:[#allocation11 + $0x20] sm:$0xff]
    %v1264 = vld [vmem:[#allocation11 + $0x28] sm:$0xff]
    %v1265 = vld [vmem:[#allocation11 + $0x30] sm:$0xff]
    %v1266 = vld [vmem:[#allocation11 + $0x38] sm:$0xff]
    %v1267 = vld [vmem:[#allocation11 + $0x40] sm:$0xff]
    %v1268 = vld [vmem:[#allocation11 + $0x48] sm:$0xff]
    %v1269 = vld [vmem:[#allocation11 + $0x50] sm:$0xff]
    %v1270 = vld [vmem:[#allocation11 + $0x58] sm:$0xff]
    %v1271 = vld [vmem:[#allocation11 + $0x60] sm:$0xff]
    %v1272 = vld [vmem:[#allocation11 + $0x68] sm:$0xff]
    %v1273 = vld [vmem:[#allocation11 + $0x70] sm:$0xff]
    %v1274 = vld [vmem:[#allocation11 + $0x78] sm:$0xff]
    %v1275 = vld [vmem:[#allocation11 + $0x80] sm:$0xff]
    %v1276 = vld [vmem:[#allocation11 + $0x88] sm:$0xff]
    %v1277 = vld [vmem:[#allocation11 + $0x90] sm:$0xff]
    %v1278 = vld [vmem:[#allocation11 + $0x98] sm:$0xff]
    %v1279 = vld [vmem:[#allocation11 + $0xa0] sm:$0xff]
    %v1280 = vld [vmem:[#allocation11 + $0xa8] sm:$0xff]
    %v1281 = vld [vmem:[#allocation11 + $0xb0] sm:$0xff]
    %v1282 = vld [vmem:[#allocation11 + $0xb8] sm:$0xff]
    %v1283 = vld [vmem:[#allocation11 + $0xc0] sm:$0xff]
    %v1284 = vld [vmem:[#allocation11 + $0xc8] sm:$0xff]
    %v1285 = vld [vmem:[#allocation11 + $0xd0] sm:$0xff]
    %v1286 = vld [vmem:[#allocation11 + $0xd8] sm:$0xff]
    %v1287 = vld [vmem:[#allocation11 + $0xe0] sm:$0xff]
    %v1288 = vld [vmem:[#allocation11 + $0xe8] sm:$0xff]
    %v1289 = vld [vmem:[#allocation11 + $0xf0] sm:$0xff]
    %v1290 = vld [vmem:[#allocation11 + $0xf8] sm:$0xff]
    %v1291 = vld [vmem:[#allocation11 + $0x100] sm:$0xff]
    %v1292 = vld [vmem:[#allocation11 + $0x108] sm:$0xff]
    %v1293 = vld [vmem:[#allocation11 + $0x110] sm:$0xff]
    %v1294 = vld [vmem:[#allocation11 + $0x118] sm:$0xff]
    %v1295 = vld [vmem:[#allocation11 + $0x120] sm:$0xff]
    %v1296 = vld [vmem:[#allocation11 + $0x128] sm:$0xff]
    %v1297 = vld [vmem:[#allocation11 + $0x130] sm:$0xff]
    %v1298 = vld [vmem:[#allocation11 + $0x138] sm:$0xff]
    %v1299 = vld [vmem:[#allocation11 + $0x140] sm:$0xff]
    %v1300 = vld [vmem:[#allocation11 + $0x148] sm:$0xff]
    %v1301 = vld [vmem:[#allocation11 + $0x150] sm:$0xff]
    %v1302 = vld [vmem:[#allocation11 + $0x158] sm:$0xff]
    %v1303 = vld [vmem:[#allocation11 + $0x160] sm:$0xff]
    %v1304 = vld [vmem:[#allocation11 + $0x168] sm:$0xff]
    %v1305 = vld [vmem:[#allocation11 + $0x170] sm:$0xff]
    %v1306 = vld [vmem:[#allocation11 + $0x178] sm:$0xff]
    %1307 = vmatprep.subr.mxu0 0.0
    %1308 = vmatpush1.msra.mxu0 %v1259
    %1309 = vmatprep.subr.mxu0 0.0
    %1310 = vmatpush1.msra.mxu0 %v1260
    %1311 = vmatprep.subr.mxu0 0.0
    %1312 = vmatpush1.msra.mxu0 %v1261
    %1313 = vmatprep.subr.mxu0 0.0
    %1314 = vmatpush1.msra.mxu0 %v1262
    %1315 = vmatprep.subr.mxu0 0.0
    %1316 = vmatpush1.msra.mxu0 %v1263
    %1317 = vmatprep.subr.mxu0 0.0
    %1318 = vmatpush1.msra.mxu0 %v1264
    %1319 = vmatprep.subr.mxu0 0.0
    %1320 = vmatpush1.msra.mxu0 %v1265
    %1321 = vmatprep.subr.mxu0 0.0
    %1322 = vmatpush1.msra.mxu0 %v1266
    %1323 = vmatprep.subr.mxu0 0.0
    %1324 = vmatpush1.msra.mxu0 %v1267
    %1325 = vmatprep.subr.mxu0 0.0
    %1326 = vmatpush1.msra.mxu0 %v1268
    %1327 = vmatprep.subr.mxu0 0.0
    %1328 = vmatpush1.msra.mxu0 %v1269
    %1329 = vmatprep.subr.mxu0 0.0
    %1330 = vmatpush1.msra.mxu0 %v1270
    %1331 = vmatprep.subr.mxu0 0.0
    %1332 = vmatpush1.msra.mxu0 %v1271
    %1333 = vmatprep.subr.mxu0 0.0
    %1334 = vmatpush1.msra.mxu0 %v1272
    %1335 = vmatprep.subr.mxu0 0.0
    %1336 = vmatpush1.msra.mxu0 %v1273
    %1337 = vmatprep.subr.mxu0 0.0
    %1338 = vmatpush1.msra.mxu0 %v1274
    %1339 = vmatprep.subr.mxu0 0.0
    %1340 = vmatpush1.msra.mxu0 %v1275
    %1341 = vmatprep.subr.mxu0 0.0
    %1342 = vmatpush1.msra.mxu0 %v1276
    %1343 = vmatprep.subr.mxu0 0.0
    %1344 = vmatpush1.msra.mxu0 %v1277
    %1345 = vmatprep.subr.mxu0 0.0
    %1346 = vmatpush1.msra.mxu0 %v1278
    %1347 = vmatprep.subr.mxu0 0.0
    %1348 = vmatpush1.msra.mxu0 %v1279
    %1349 = vmatprep.subr.mxu0 0.0
    %1350 = vmatpush1.msra.mxu0 %v1280
    %1351 = vmatprep.subr.mxu0 0.0
    %1352 = vmatpush1.msra.mxu0 %v1281
    %1353 = vmatprep.subr.mxu0 0.0
    %1354 = vmatpush1.msra.mxu0 %v1282
    %1355 = vmatprep.subr.mxu0 0.0
    %1356 = vmatpush1.msra.mxu0 %v1283
    %1357 = vmatprep.subr.mxu0 0.0
    %1358 = vmatpush1.msra.mxu0 %v1284
    %1359 = vmatprep.subr.mxu0 0.0
    %1360 = vmatpush1.msra.mxu0 %v1285
    %1361 = vmatprep.subr.mxu0 0.0
    %1362 = vmatpush1.msra.mxu0 %v1286
    %1363 = vmatprep.subr.mxu0 0.0
    %1364 = vmatpush1.msra.mxu0 %v1287
    %1365 = vmatprep.subr.mxu0 0.0
    %1366 = vmatpush1.msra.mxu0 %v1288
    %1367 = vmatprep.subr.mxu0 0.0
    %1368 = vmatpush1.msra.mxu0 %v1289
    %1369 = vmatprep.subr.mxu0 0.0
    %1370 = vmatpush1.msra.mxu0 %v1290
    %1371 = vmatprep.mubr.f32.mxu0 %v1152
    %1372 = vmatmul.mubr.f32.gmra.mrb[0].mxu0 %v1230
    %v1373 = vpop.f32.mrb[0].mxu0
    %v1374 = vadd.f32 0.0, %v1373
    %v1375 = vpop.f32.mrb[0].mxu0
    %1376 = vmatprep.mubr.f32.mxu0 %v1153
    %1377 = vmatmul.mubr.f32.gmra.mrb[0].mxu0 %v1231
    %v1378 = vpop.f32.mrb[0].mxu0
    %v1379 = vadd.f32 0.0, %v1378
    %v1380 = vpop.f32.mrb[0].mxu0
    %1381 = vmatprep.mubr.f32.mxu0 %v1154
    %1382 = vmatmul.mubr.f32.gmra.mrb[0].mxu0 %v1232
    %v1383 = vpop.f32.mrb[0].mxu0
    %v1384 = vadd.f32 0.0, %v1383
    %v1385 = vpop.f32.mrb[0].mxu0
    %1386 = vmatprep.mubr.f32.mxu0 %v1155
    %1387 = vmatmul.mubr.f32.gmra.mrb[0].mxu0 %v1233
    %v1388 = vpop.f32.mrb[0].mxu0
    %v1389 = vadd.f32 0.0, %v1388
    %v1390 = vpop.f32.mrb[0].mxu0
    %1391 = vdwg.mxu0
    %1392 = vmatprep.subr.mxu0 0.0
    %1393 = vmatpush1.msra.mxu0 %v1291
    %1394 = vmatprep.subr.mxu0 0.0
    %1395 = vmatpush1.msra.mxu0 %v1292
    %1396 = vmatprep.subr.mxu0 0.0
    %1397 = vmatpush1.msra.mxu0 %v1293
    %1398 = vmatprep.subr.mxu0 0.0
    %1399 = vmatpush1.msra.mxu0 %v1294
    %1400 = vmatprep.subr.mxu0 0.0
    %1401 = vmatpush1.msra.mxu0 %v1295
    %1402 = vmatprep.subr.mxu0 0.0
    %1403 = vmatpush1.msra.mxu0 %v1296
    %1404 = vmatprep.subr.mxu0 0.0
    %1405 = vmatpush1.msra.mxu0 %v1297
    %1406 = vmatprep.subr.mxu0 0.0
    %1407 = vmatpush1.msra.mxu0 %v1298
    %1408 = vmatprep.subr.mxu0 0.0
    %1409 = vmatpush1.msra.mxu0 %v1299
    %1410 = vmatprep.subr.mxu0 0.0
    %1411 = vmatpush1.msra.mxu0 %v1300
    %1412 = vmatprep.subr.mxu0 0.0
    %1413 = vmatpush1.msra.mxu0 %v1301
    %1414 = vmatprep.subr.mxu0 0.0
    %1415 = vmatpush1.msra.mxu0 %v1302
    %1416 = vmatprep.subr.mxu0 0.0
    %1417 = vmatpush1.msra.mxu0 %v1303
    %1418 = vmatprep.subr.mxu0 0.0
    %1419 = vmatpush1.msra.mxu0 %v1304
    %1420 = vmatprep.subr.mxu0 0.0
    %1421 = vmatpush1.msra.mxu0 %v1305
    %1422 = vmatprep.subr.mxu0 0.0
    %1423 = vmatpush1.msra.mxu0 %v1306
    %1424 = vmatprep.subr.mxu0 0.0
    %1425 = vmatpush1.msra.mxu0 0.0
    %1426 = vmatprep.subr.mxu0 0.0
    %1427 = vmatpush1.msra.mxu0 0.0
    %1428 = vmatprep.subr.mxu0 0.0
    %1429 = vmatpush1.msra.mxu0 0.0
    %1430 = vmatprep.subr.mxu0 0.0
    %1431 = vmatpush1.msra.mxu0 0.0
    %1432 = vmatprep.subr.mxu0 0.0
    %1433 = vmatpush1.msra.mxu0 0.0
    %1434 = vmatprep.subr.mxu0 0.0
    %1435 = vmatpush1.msra.mxu0 0.0
    %1436 = vmatprep.subr.mxu0 0.0
    %1437 = vmatpush1.msra.mxu0 0.0
    %1438 = vmatprep.subr.mxu0 0.0
    %1439 = vmatpush1.msra.mxu0 0.0
    %1440 = vmatprep.subr.mxu0 0.0
    %1441 = vmatpush1.msra.mxu0 0.0
    %1442 = vmatprep.subr.mxu0 0.0
    %1443 = vmatpush1.msra.mxu0 0.0
    %1444 = vmatprep.subr.mxu0 0.0
    %1445 = vmatpush1.msra.mxu0 0.0
    %1446 = vmatprep.subr.mxu0 0.0
    %1447 = vmatpush1.msra.mxu0 0.0
    %1448 = vmatprep.subr.mxu0 0.0
    %1449 = vmatpush1.msra.mxu0 0.0
    %1450 = vmatprep.subr.mxu0 0.0
    %1451 = vmatpush1.msra.mxu0 0.0
    %1452 = vmatprep.subr.mxu0 0.0
    %1453 = vmatpush1.msra.mxu0 0.0
    %1454 = vmatprep.subr.mxu0 0.0
    %1455 = vmatpush1.msra.mxu0 0.0
    %1456 = vmatprep.mubr.f32.mxu0 0.0
    %1457 = vmatmul.mubr.f32.gmra.mrb[0].mxu0 %v1255
    %v1458 = vpop.f32.mrb[0].mxu0
    %v1459 = vadd.f32 %v1374, %v1458
    %v1460 = vpop.f32.mrb[0].mxu0
    %1461 = vmatprep.mubr.f32.mxu0 0.0
    %1462 = vmatmul.mubr.f32.gmra.mrb[0].mxu0 %v1256
    %v1463 = vpop.f32.mrb[0].mxu0
    %v1464 = vadd.f32 %v1379, %v1463
    %v1465 = vpop.f32.mrb[0].mxu0
    %1466 = vmatprep.mubr.f32.mxu0 0.0
    %1467 = vmatmul.mubr.f32.gmra.mrb[0].mxu0 %v1257
    %v1468 = vpop.f32.mrb[0].mxu0
    %v1469 = vadd.f32 %v1384, %v1468
    %v1470 = vpop.f32.mrb[0].mxu0
    %1471 = vmatprep.mubr.f32.mxu0 0.0
    %1472 = vmatmul.mubr.f32.gmra.mrb[0].mxu0 %v1258
    %v1473 = vpop.f32.mrb[0].mxu0
    %v1474 = vadd.f32 %v1389, %v1473
    %v1475 = vpop.f32.mrb[0].mxu0
    %1476 = vdwg.mxu0
    %v1477 = vadd.f32 %v1459, %v1464
    %v1478 = vadd.f32 %v1477, %v1469
    %v1479 = vadd.f32 %v1478, %v1474
    %v1480 = vrot.slane %v1479, 4
    %v1481 = vadd.f32 %v1479, %v1480
    %v1482 = vrot.slane %v1481, 2
    %v1483 = vadd.f32 %v1481, %v1482
    %v1484 = vrot.slane %v1483, 1
    %v1485 = vadd.f32 %v1483, %v1484
    %1486 = vst [vmem:[#allocation4] sm:$0x1] %v1485
    %v1487 = vmul.f32 %v1459, %v1459
    %v1488 = vmul.f32 %v1464, %v1464
    %v1489 = vmul.f32 %v1469, %v1469
    %v1490 = vmul.f32 %v1474, %v1474
    %v1491 = vadd.f32 %v1487, %v1488
    %v1492 = vadd.f32 %v1491, %v1489
    %v1493 = vadd.f32 %v1492, %v1490
    %v1494 = vrot.slane %v1493, 4
    %v1495 = vadd.f32 %v1493, %v1494
    %v1496 = vrot.slane %v1495, 2
    %v1497 = vadd.f32 %v1495, %v1496
    %v1498 = vrot.slane %v1497, 1
    %v1499 = vadd.f32 %v1497, %v1498
    %1500 = vst [vmem:[#allocation4 + $0x1] sm:$0x1] %v1499
    %v1501 = vld [vmem:[#allocation4] sm:$0x3]
    %v1502 = vld [vmem:[%s6] sm:$0xff]
    %1503 = vmatprep.subr.mxu0 0.0
    %v1504 = vand.u32 %v1502, 4294901760
    %1505 = vmatpush1.xpose.msra.mxu0 %v1504
    %1506 = vmatprep.subr.mxu0 0.0
    %1507 = vmatpush1.xpose.msra.mxu0 0.0
    %1508 = vmatprep.subr.mxu0 0.0
    %1509 = vmatpush1.xpose.msra.mxu0 0.0
    %1510 = vmatprep.subr.mxu0 0.0
    %1511 = vmatpush1.xpose.msra.mxu0 0.0
    %1512 = vmatprep.subr.mxu0 0.0
    %1513 = vmatpush1.xpose.msra.mxu0 0.0
    %1514 = vmatprep.subr.mxu0 0.0
    %1515 = vmatpush1.xpose.msra.mxu0 0.0
    %1516 = vmatprep.subr.mxu0 0.0
    %1517 = vmatpush1.xpose.msra.mxu0 0.0
    %1518 = vmatprep.subr.mxu0 0.0
    %1519 = vmatpush1.xpose.msra.mxu0 0.0
    %1520 = vmatprep.subr.mxu0 0.0
    %1521 = vmatpush1.xpose.msra.mxu0 0.0
    %1522 = vmatprep.subr.mxu0 0.0
    %1523 = vmatpush1.xpose.msra.mxu0 0.0
    %1524 = vmatprep.subr.mxu0 0.0
    %1525 = vmatpush1.xpose.msra.mxu0 0.0
    %1526 = vmatprep.subr.mxu0 0.0
    %1527 = vmatpush1.xpose.msra.mxu0 0.0
    %1528 = vmatprep.subr.mxu0 0.0
    %1529 = vmatpush1.xpose.msra.mxu0 0.0
    %1530 = vmatprep.subr.mxu0 0.0
    %1531 = vmatpush1.xpose.msra.mxu0 0.0
    %1532 = vmatprep.subr.mxu0 0.0
    %1533 = vmatpush1.xpose.msra.mxu0 0.0
    %1534 = vmatprep.subr.mxu0 0.0
    %1535 = vmatpush1.xpose.msra.mxu0 0.0
    %1536 = vmatprep.subr.mxu0 0.0
    %1537 = vmatpush1.xpose.msra.mxu0 0.0
    %1538 = vmatprep.subr.mxu0 0.0
    %1539 = vmatpush1.xpose.msra.mxu0 0.0
    %1540 = vmatprep.subr.mxu0 0.0
    %1541 = vmatpush1.xpose.msra.mxu0 0.0
    %1542 = vmatprep.subr.mxu0 0.0
    %1543 = vmatpush1.xpose.msra.mxu0 0.0
    %1544 = vmatprep.subr.mxu0 0.0
    %1545 = vmatpush1.xpose.msra.mxu0 0.0
    %1546 = vmatprep.subr.mxu0 0.0
    %1547 = vmatpush1.xpose.msra.mxu0 0.0
    %1548 = vmatprep.subr.mxu0 0.0
    %1549 = vmatpush1.xpose.msra.mxu0 0.0
    %1550 = vmatprep.subr.mxu0 0.0
    %1551 = vmatpush1.xpose.msra.mxu0 0.0
    %1552 = vmatprep.subr.mxu0 0.0
    %1553 = vmatpush1.xpose.msra.mxu0 0.0
    %1554 = vmatprep.subr.mxu0 0.0
    %1555 = vmatpush1.xpose.msra.mxu0 0.0
    %1556 = vmatprep.subr.mxu0 0.0
    %1557 = vmatpush1.xpose.msra.mxu0 0.0
    %1558 = vmatprep.subr.mxu0 0.0
    %1559 = vmatpush1.xpose.msra.mxu0 0.0
    %1560 = vmatprep.subr.mxu0 0.0
    %1561 = vmatpush1.xpose.msra.mxu0 0.0
    %1562 = vmatprep.subr.mxu0 0.0
    %1563 = vmatpush1.xpose.msra.mxu0 0.0
    %1564 = vmatprep.subr.mxu0 0.0
    %1565 = vmatpush1.xpose.msra.mxu0 0.0
    %1566 = vmatprep.subr.mxu0 0.0
    %1567 = vmatpush1.xpose.msra.mxu0 0.0
    %1568 = vmatprep.mubr.f32.mxu0 0.0
    %v1569 = vand.u32 %v1501, 4294901760
    %v1570 = vsub.f32 %v1501, %v1569
    %v1571 = vand.u32 %v1570, 4294901760
    %v1572 = vsub.f32 %v1570, %v1571
    %v1573 = vand.u32 %v1572, 4294901760
    %1574 = vmatmul.mubr.f32.gmra.mrb[0].mxu0 %v1573
    %v1575 = vpop.f32.mrb[0].mxu0
    %v1576 = vadd.f32 0.0, %v1575
    %v1577 = vpop.f32.mrb[0].mxu0
    %1578 = vdwg.mxu0
    %1579 = vmatprep.subr.mxu0 0.0
    %v1580 = vand.u32 %v1502, 4294901760
    %v1581 = vsub.f32 %v1502, %v1580
    %v1582 = vand.u32 %v1581, 4294901760
    %v1583 = vsub.f32 %v1581, %v1582
    %v1584 = vand.u32 %v1583, 4294901760
    %1585 = vmatpush1.xpose.msra.mxu0 %v1584
    %1586 = vmatprep.subr.mxu0 0.0
    %1587 = vmatpush1.xpose.msra.mxu0 0.0
    %1588 = vmatprep.subr.mxu0 0.0
    %1589 = vmatpush1.xpose.msra.mxu0 0.0
    %1590 = vmatprep.subr.mxu0 0.0
    %1591 = vmatpush1.xpose.msra.mxu0 0.0
    %1592 = vmatprep.subr.mxu0 0.0
    %1593 = vmatpush1.xpose.msra.mxu0 0.0
    %1594 = vmatprep.subr.mxu0 0.0
    %1595 = vmatpush1.xpose.msra.mxu0 0.0
    %1596 = vmatprep.subr.mxu0 0.0
    %1597 = vmatpush1.xpose.msra.mxu0 0.0
    %1598 = vmatprep.subr.mxu0 0.0
    %1599 = vmatpush1.xpose.msra.mxu0 0.0
    %1600 = vmatprep.subr.mxu0 0.0
    %1601 = vmatpush1.xpose.msra.mxu0 0.0
    %1602 = vmatprep.subr.mxu0 0.0
    %1603 = vmatpush1.xpose.msra.mxu0 0.0
    %1604 = vmatprep.subr.mxu0 0.0
    %1605 = vmatpush1.xpose.msra.mxu0 0.0
    %1606 = vmatprep.subr.mxu0 0.0
    %1607 = vmatpush1.xpose.msra.mxu0 0.0
    %1608 = vmatprep.subr.mxu0 0.0
    %1609 = vmatpush1.xpose.msra.mxu0 0.0
    %1610 = vmatprep.subr.mxu0 0.0
    %1611 = vmatpush1.xpose.msra.mxu0 0.0
    %1612 = vmatprep.subr.mxu0 0.0
    %1613 = vmatpush1.xpose.msra.mxu0 0.0
    %1614 = vmatprep.subr.mxu0 0.0
    %1615 = vmatpush1.xpose.msra.mxu0 0.0
    %1616 = vmatprep.subr.mxu0 0.0
    %1617 = vmatpush1.xpose.msra.mxu0 0.0
    %1618 = vmatprep.subr.mxu0 0.0
    %1619 = vmatpush1.xpose.msra.mxu0 0.0
    %1620 = vmatprep.subr.mxu0 0.0
    %1621 = vmatpush1.xpose.msra.mxu0 0.0
    %1622 = vmatprep.subr.mxu0 0.0
    %1623 = vmatpush1.xpose.msra.mxu0 0.0
    %1624 = vmatprep.subr.mxu0 0.0
    %1625 = vmatpush1.xpose.msra.mxu0 0.0
    %1626 = vmatprep.subr.mxu0 0.0
    %1627 = vmatpush1.xpose.msra.mxu0 0.0
    %1628 = vmatprep.subr.mxu0 0.0
    %1629 = vmatpush1.xpose.msra.mxu0 0.0
    %1630 = vmatprep.subr.mxu0 0.0
    %1631 = vmatpush1.xpose.msra.mxu0 0.0
    %1632 = vmatprep.subr.mxu0 0.0
    %1633 = vmatpush1.xpose.msra.mxu0 0.0
    %1634 = vmatprep.subr.mxu0 0.0
    %1635 = vmatpush1.xpose.msra.mxu0 0.0
    %1636 = vmatprep.subr.mxu0 0.0
    %1637 = vmatpush1.xpose.msra.mxu0 0.0
    %1638 = vmatprep.subr.mxu0 0.0
    %1639 = vmatpush1.xpose.msra.mxu0 0.0
    %1640 = vmatprep.subr.mxu0 0.0
    %1641 = vmatpush1.xpose.msra.mxu0 0.0
    %1642 = vmatprep.subr.mxu0 0.0
    %1643 = vmatpush1.xpose.msra.mxu0 0.0
    %1644 = vmatprep.subr.mxu0 0.0
    %1645 = vmatpush1.xpose.msra.mxu0 0.0
    %1646 = vmatprep.subr.mxu0 0.0
    %1647 = vmatpush1.xpose.msra.mxu0 0.0
    %1648 = vmatprep.mubr.f32.mxu0 0.0
    %v1649 = vand.u32 %v1501, 4294901760
    %1650 = vmatmul.mubr.f32.gmra.mrb[0].mxu0 %v1649
    %v1651 = vpop.f32.mrb[0].mxu0
    %v1652 = vadd.f32 %v1576, %v1651
    %v1653 = vpop.f32.mrb[0].mxu0
    %1654 = vdwg.mxu0
    %1655 = vmatprep.subr.mxu0 0.0
    %v1656 = vand.u32 %v1502, 4294901760
    %v1657 = vsub.f32 %v1502, %v1656
    %1658 = vmatpush1.xpose.msra.mxu0 %v1657
    %1659 = vmatprep.subr.mxu0 0.0
    %1660 = vmatpush1.xpose.msra.mxu0 0.0
    %1661 = vmatprep.subr.mxu0 0.0
    %1662 = vmatpush1.xpose.msra.mxu0 0.0
    %1663 = vmatprep.subr.mxu0 0.0
    %1664 = vmatpush1.xpose.msra.mxu0 0.0
    %1665 = vmatprep.subr.mxu0 0.0
    %1666 = vmatpush1.xpose.msra.mxu0 0.0
    %1667 = vmatprep.subr.mxu0 0.0
    %1668 = vmatpush1.xpose.msra.mxu0 0.0
    %1669 = vmatprep.subr.mxu0 0.0
    %1670 = vmatpush1.xpose.msra.mxu0 0.0
    %1671 = vmatprep.subr.mxu0 0.0
    %1672 = vmatpush1.xpose.msra.mxu0 0.0
    %1673 = vmatprep.subr.mxu0 0.0
    %1674 = vmatpush1.xpose.msra.mxu0 0.0
    %1675 = vmatprep.subr.mxu0 0.0
    %1676 = vmatpush1.xpose.msra.mxu0 0.0
    %1677 = vmatprep.subr.mxu0 0.0
    %1678 = vmatpush1.xpose.msra.mxu0 0.0
    %1679 = vmatprep.subr.mxu0 0.0
    %1680 = vmatpush1.xpose.msra.mxu0 0.0
    %1681 = vmatprep.subr.mxu0 0.0
    %1682 = vmatpush1.xpose.msra.mxu0 0.0
    %1683 = vmatprep.subr.mxu0 0.0
    %1684 = vmatpush1.xpose.msra.mxu0 0.0
    %1685 = vmatprep.subr.mxu0 0.0
    %1686 = vmatpush1.xpose.msra.mxu0 0.0
    %1687 = vmatprep.subr.mxu0 0.0
    %1688 = vmatpush1.xpose.msra.mxu0 0.0
    %1689 = vmatprep.subr.mxu0 0.0
    %1690 = vmatpush1.xpose.msra.mxu0 0.0
    %1691 = vmatprep.subr.mxu0 0.0
    %1692 = vmatpush1.xpose.msra.mxu0 0.0
    %1693 = vmatprep.subr.mxu0 0.0
    %1694 = vmatpush1.xpose.msra.mxu0 0.0
    %1695 = vmatprep.subr.mxu0 0.0
    %1696 = vmatpush1.xpose.msra.mxu0 0.0
    %1697 = vmatprep.subr.mxu0 0.0
    %1698 = vmatpush1.xpose.msra.mxu0 0.0
    %1699 = vmatprep.subr.mxu0 0.0
    %1700 = vmatpush1.xpose.msra.mxu0 0.0
    %1701 = vmatprep.subr.mxu0 0.0
    %1702 = vmatpush1.xpose.msra.mxu0 0.0
    %1703 = vmatprep.subr.mxu0 0.0
    %1704 = vmatpush1.xpose.msra.mxu0 0.0
    %1705 = vmatprep.subr.mxu0 0.0
    %1706 = vmatpush1.xpose.msra.mxu0 0.0
    %1707 = vmatprep.subr.mxu0 0.0
    %1708 = vmatpush1.xpose.msra.mxu0 0.0
    %1709 = vmatprep.subr.mxu0 0.0
    %1710 = vmatpush1.xpose.msra.mxu0 0.0
    %1711 = vmatprep.subr.mxu0 0.0
    %1712 = vmatpush1.xpose.msra.mxu0 0.0
    %1713 = vmatprep.subr.mxu0 0.0
    %1714 = vmatpush1.xpose.msra.mxu0 0.0
    %1715 = vmatprep.subr.mxu0 0.0
    %1716 = vmatpush1.xpose.msra.mxu0 0.0
    %1717 = vmatprep.subr.mxu0 0.0
    %1718 = vmatpush1.xpose.msra.mxu0 0.0
    %1719 = vmatprep.subr.mxu0 0.0
    %1720 = vmatpush1.xpose.msra.mxu0 0.0
    %1721 = vmatprep.mubr.f32.mxu0 0.0
    %v1722 = vand.u32 %v1501, 4294901760
    %v1723 = vsub.f32 %v1501, %v1722
    %1724 = vmatmul.mubr.f32.gmra.mrb[0].mxu0 %v1723
    %v1725 = vpop.f32.mrb[0].mxu0
    %v1726 = vadd.f32 %v1652, %v1725
    %v1727 = vpop.f32.mrb[0].mxu0
    %1728 = vdwg.mxu0
    %1729 = vmatprep.subr.mxu0 0.0
    %v1730 = vand.u32 %v1502, 4294901760
    %1731 = vmatpush1.xpose.msra.mxu0 %v1730
    %1732 = vmatprep.subr.mxu0 0.0
    %1733 = vmatpush1.xpose.msra.mxu0 0.0
    %1734 = vmatprep.subr.mxu0 0.0
    %1735 = vmatpush1.xpose.msra.mxu0 0.0
    %1736 = vmatprep.subr.mxu0 0.0
    %1737 = vmatpush1.xpose.msra.mxu0 0.0
    %1738 = vmatprep.subr.mxu0 0.0
    %1739 = vmatpush1.xpose.msra.mxu0 0.0
    %1740 = vmatprep.subr.mxu0 0.0
    %1741 = vmatpush1.xpose.msra.mxu0 0.0
    %1742 = vmatprep.subr.mxu0 0.0
    %1743 = vmatpush1.xpose.msra.mxu0 0.0
    %1744 = vmatprep.subr.mxu0 0.0
    %1745 = vmatpush1.xpose.msra.mxu0 0.0
    %1746 = vmatprep.subr.mxu0 0.0
    %1747 = vmatpush1.xpose.msra.mxu0 0.0
    %1748 = vmatprep.subr.mxu0 0.0
    %1749 = vmatpush1.xpose.msra.mxu0 0.0
    %1750 = vmatprep.subr.mxu0 0.0
    %1751 = vmatpush1.xpose.msra.mxu0 0.0
    %1752 = vmatprep.subr.mxu0 0.0
    %1753 = vmatpush1.xpose.msra.mxu0 0.0
    %1754 = vmatprep.subr.mxu0 0.0
    %1755 = vmatpush1.xpose.msra.mxu0 0.0
    %1756 = vmatprep.subr.mxu0 0.0
    %1757 = vmatpush1.xpose.msra.mxu0 0.0
    %1758 = vmatprep.subr.mxu0 0.0
    %1759 = vmatpush1.xpose.msra.mxu0 0.0
    %1760 = vmatprep.subr.mxu0 0.0
    %1761 = vmatpush1.xpose.msra.mxu0 0.0
    %1762 = vmatprep.subr.mxu0 0.0
    %1763 = vmatpush1.xpose.msra.mxu0 0.0
    %1764 = vmatprep.subr.mxu0 0.0
    %1765 = vmatpush1.xpose.msra.mxu0 0.0
    %1766 = vmatprep.subr.mxu0 0.0
    %1767 = vmatpush1.xpose.msra.mxu0 0.0
    %1768 = vmatprep.subr.mxu0 0.0
    %1769 = vmatpush1.xpose.msra.mxu0 0.0
    %1770 = vmatprep.subr.mxu0 0.0
    %1771 = vmatpush1.xpose.msra.mxu0 0.0
    %1772 = vmatprep.subr.mxu0 0.0
    %1773 = vmatpush1.xpose.msra.mxu0 0.0
    %1774 = vmatprep.subr.mxu0 0.0
    %1775 = vmatpush1.xpose.msra.mxu0 0.0
    %1776 = vmatprep.subr.mxu0 0.0
    %1777 = vmatpush1.xpose.msra.mxu0 0.0
    %1778 = vmatprep.subr.mxu0 0.0
    %1779 = vmatpush1.xpose.msra.mxu0 0.0
    %1780 = vmatprep.subr.mxu0 0.0
    %1781 = vmatpush1.xpose.msra.mxu0 0.0
    %1782 = vmatprep.subr.mxu0 0.0
    %1783 = vmatpush1.xpose.msra.mxu0 0.0
    %1784 = vmatprep.subr.mxu0 0.0
    %1785 = vmatpush1.xpose.msra.mxu0 0.0
    %1786 = vmatprep.subr.mxu0 0.0
    %1787 = vmatpush1.xpose.msra.mxu0 0.0
    %1788 = vmatprep.subr.mxu0 0.0
    %1789 = vmatpush1.xpose.msra.mxu0 0.0
    %1790 = vmatprep.subr.mxu0 0.0
    %1791 = vmatpush1.xpose.msra.mxu0 0.0
    %1792 = vmatprep.subr.mxu0 0.0
    %1793 = vmatpush1.xpose.msra.mxu0 0.0
    %1794 = vmatprep.mubr.f32.mxu0 0.0
    %v1795 = vand.u32 %v1501, 4294901760
    %v1796 = vsub.f32 %v1501, %v1795
    %v1797 = vand.u32 %v1796, 4294901760
    %1798 = vmatmul.mubr.f32.gmra.mrb[0].mxu0 %v1797
    %v1799 = vpop.f32.mrb[0].mxu0
    %v1800 = vadd.f32 %v1726, %v1799
    %v1801 = vpop.f32.mrb[0].mxu0
    %1802 = vdwg.mxu0
    %1803 = vmatprep.subr.mxu0 0.0
    %v1804 = vand.u32 %v1502, 4294901760
    %v1805 = vsub.f32 %v1502, %v1804
    %v1806 = vand.u32 %v1805, 4294901760
    %1807 = vmatpush1.xpose.msra.mxu0 %v1806
    %1808 = vmatprep.subr.mxu0 0.0
    %1809 = vmatpush1.xpose.msra.mxu0 0.0
    %1810 = vmatprep.subr.mxu0 0.0
    %1811 = vmatpush1.xpose.msra.mxu0 0.0
    %1812 = vmatprep.subr.mxu0 0.0
    %1813 = vmatpush1.xpose.msra.mxu0 0.0
    %1814 = vmatprep.subr.mxu0 0.0
    %1815 = vmatpush1.xpose.msra.mxu0 0.0
    %1816 = vmatprep.subr.mxu0 0.0
    %1817 = vmatpush1.xpose.msra.mxu0 0.0
    %1818 = vmatprep.subr.mxu0 0.0
    %1819 = vmatpush1.xpose.msra.mxu0 0.0
    %1820 = vmatprep.subr.mxu0 0.0
    %1821 = vmatpush1.xpose.msra.mxu0 0.0
    %1822 = vmatprep.subr.mxu0 0.0
    %1823 = vmatpush1.xpose.msra.mxu0 0.0
    %1824 = vmatprep.subr.mxu0 0.0
    %1825 = vmatpush1.xpose.msra.mxu0 0.0
    %1826 = vmatprep.subr.mxu0 0.0
    %1827 = vmatpush1.xpose.msra.mxu0 0.0
    %1828 = vmatprep.subr.mxu0 0.0
    %1829 = vmatpush1.xpose.msra.mxu0 0.0
    %1830 = vmatprep.subr.mxu0 0.0
    %1831 = vmatpush1.xpose.msra.mxu0 0.0
    %1832 = vmatprep.subr.mxu0 0.0
    %1833 = vmatpush1.xpose.msra.mxu0 0.0
    %1834 = vmatprep.subr.mxu0 0.0
    %1835 = vmatpush1.xpose.msra.mxu0 0.0
    %1836 = vmatprep.subr.mxu0 0.0
    %1837 = vmatpush1.xpose.msra.mxu0 0.0
    %1838 = vmatprep.subr.mxu0 0.0
    %1839 = vmatpush1.xpose.msra.mxu0 0.0
    %1840 = vmatprep.subr.mxu0 0.0
    %1841 = vmatpush1.xpose.msra.mxu0 0.0
    %1842 = vmatprep.subr.mxu0 0.0
    %1843 = vmatpush1.xpose.msra.mxu0 0.0
    %1844 = vmatprep.subr.mxu0 0.0
    %1845 = vmatpush1.xpose.msra.mxu0 0.0
    %1846 = vmatprep.subr.mxu0 0.0
    %1847 = vmatpush1.xpose.msra.mxu0 0.0
    %1848 = vmatprep.subr.mxu0 0.0
    %1849 = vmatpush1.xpose.msra.mxu0 0.0
    %1850 = vmatprep.subr.mxu0 0.0
    %1851 = vmatpush1.xpose.msra.mxu0 0.0
    %1852 = vmatprep.subr.mxu0 0.0
    %1853 = vmatpush1.xpose.msra.mxu0 0.0
    %1854 = vmatprep.subr.mxu0 0.0
    %1855 = vmatpush1.xpose.msra.mxu0 0.0
    %1856 = vmatprep.subr.mxu0 0.0
    %1857 = vmatpush1.xpose.msra.mxu0 0.0
    %1858 = vmatprep.subr.mxu0 0.0
    %1859 = vmatpush1.xpose.msra.mxu0 0.0
    %1860 = vmatprep.subr.mxu0 0.0
    %1861 = vmatpush1.xpose.msra.mxu0 0.0
    %1862 = vmatprep.subr.mxu0 0.0
    %1863 = vmatpush1.xpose.msra.mxu0 0.0
    %1864 = vmatprep.subr.mxu0 0.0
    %1865 = vmatpush1.xpose.msra.mxu0 0.0
    %1866 = vmatprep.subr.mxu0 0.0
    %1867 = vmatpush1.xpose.msra.mxu0 0.0
    %1868 = vmatprep.subr.mxu0 0.0
    %1869 = vmatpush1.xpose.msra.mxu0 0.0
    %1870 = vmatprep.mubr.f32.mxu0 0.0
    %v1871 = vand.u32 %v1501, 4294901760
    %1872 = vmatmul.mubr.f32.gmra.mrb[0].mxu0 %v1871
    %v1873 = vpop.f32.mrb[0].mxu0
    %v1874 = vadd.f32 %v1800, %v1873
    %v1875 = vpop.f32.mrb[0].mxu0
    %1876 = vdwg.mxu0
    %1877 = vmatprep.subr.mxu0 0.0
    %v1878 = vand.u32 %v1502, 4294901760
    %1879 = vmatpush1.xpose.msra.mxu0 %v1878
    %1880 = vmatprep.subr.mxu0 0.0
    %1881 = vmatpush1.xpose.msra.mxu0 0.0
    %1882 = vmatprep.subr.mxu0 0.0
    %1883 = vmatpush1.xpose.msra.mxu0 0.0
    %1884 = vmatprep.subr.mxu0 0.0
    %1885 = vmatpush1.xpose.msra.mxu0 0.0
    %1886 = vmatprep.subr.mxu0 0.0
    %1887 = vmatpush1.xpose.msra.mxu0 0.0
    %1888 = vmatprep.subr.mxu0 0.0
    %1889 = vmatpush1.xpose.msra.mxu0 0.0
    %1890 = vmatprep.subr.mxu0 0.0
    %1891 = vmatpush1.xpose.msra.mxu0 0.0
    %1892 = vmatprep.subr.mxu0 0.0
    %1893 = vmatpush1.xpose.msra.mxu0 0.0
    %1894 = vmatprep.subr.mxu0 0.0
    %1895 = vmatpush1.xpose.msra.mxu0 0.0
    %1896 = vmatprep.subr.mxu0 0.0
    %1897 = vmatpush1.xpose.msra.mxu0 0.0
    %1898 = vmatprep.subr.mxu0 0.0
    %1899 = vmatpush1.xpose.msra.mxu0 0.0
    %1900 = vmatprep.subr.mxu0 0.0
    %1901 = vmatpush1.xpose.msra.mxu0 0.0
    %1902 = vmatprep.subr.mxu0 0.0
    %1903 = vmatpush1.xpose.msra.mxu0 0.0
    %1904 = vmatprep.subr.mxu0 0.0
    %1905 = vmatpush1.xpose.msra.mxu0 0.0
    %1906 = vmatprep.subr.mxu0 0.0
    %1907 = vmatpush1.xpose.msra.mxu0 0.0
    %1908 = vmatprep.subr.mxu0 0.0
    %1909 = vmatpush1.xpose.msra.mxu0 0.0
    %1910 = vmatprep.subr.mxu0 0.0
    %1911 = vmatpush1.xpose.msra.mxu0 0.0
    %1912 = vmatprep.subr.mxu0 0.0
    %1913 = vmatpush1.xpose.msra.mxu0 0.0
    %1914 = vmatprep.subr.mxu0 0.0
    %1915 = vmatpush1.xpose.msra.mxu0 0.0
    %1916 = vmatprep.subr.mxu0 0.0
    %1917 = vmatpush1.xpose.msra.mxu0 0.0
    %1918 = vmatprep.subr.mxu0 0.0
    %1919 = vmatpush1.xpose.msra.mxu0 0.0
    %1920 = vmatprep.subr.mxu0 0.0
    %1921 = vmatpush1.xpose.msra.mxu0 0.0
    %1922 = vmatprep.subr.mxu0 0.0
    %1923 = vmatpush1.xpose.msra.mxu0 0.0
    %1924 = vmatprep.subr.mxu0 0.0
    %1925 = vmatpush1.xpose.msra.mxu0 0.0
    %1926 = vmatprep.subr.mxu0 0.0
    %1927 = vmatpush1.xpose.msra.mxu0 0.0
    %1928 = vmatprep.subr.mxu0 0.0
    %1929 = vmatpush1.xpose.msra.mxu0 0.0
    %1930 = vmatprep.subr.mxu0 0.0
    %1931 = vmatpush1.xpose.msra.mxu0 0.0
    %1932 = vmatprep.subr.mxu0 0.0
    %1933 = vmatpush1.xpose.msra.mxu0 0.0
    %1934 = vmatprep.subr.mxu0 0.0
    %1935 = vmatpush1.xpose.msra.mxu0 0.0
    %1936 = vmatprep.subr.mxu0 0.0
    %1937 = vmatpush1.xpose.msra.mxu0 0.0
    %1938 = vmatprep.subr.mxu0 0.0
    %1939 = vmatpush1.xpose.msra.mxu0 0.0
    %1940 = vmatprep.subr.mxu0 0.0
    %1941 = vmatpush1.xpose.msra.mxu0 0.0
    %1942 = vmatprep.mubr.f32.mxu0 0.0
    %v1943 = vand.u32 %v1501, 4294901760
    %1944 = vmatmul.mubr.f32.gmra.mrb[0].mxu0 %v1943
    %v1945 = vpop.f32.mrb[0].mxu0
    %v1946 = vadd.f32 %v1874, %v1945
    %v1947 = vpop.f32.mrb[0].mxu0
    %1948 = vdwg.mxu0
    %v1949 = vmul.f32 %v1946, 0.001953125
    %v1950 = vmul.f32 %v1949, %v1949
    %v1952 = vrot.slane %v1950, 7
    %v1954 = vsub.f32 %v1949, %v1952
    %v1955 = vadd.f32 %v1954, 1e-05
    %v1956 = vrsqrt.pop %v1955
    %v1957 = vld [vmem:[#allocation12] sm:$0x1]
    %v1959 = vrot.slane %v1957, 7
    %v1961 = vmul.f32 %v1956, %v1959
    %1962 = vst.msk [vmem:[#allocation5 - $0x1] sm:$0x2] %vm670, %v1961
    %v1963 = vld [vmem:[#allocation12 + $0x1] sm:$0x1]
    %v1965 = vrot.slane %v1961, 1
    %v1967 = vmul.f32 %v1949, %v1965
    %v1968 = vsub.f32 %v1963, %v1967
    %1969 = vst.msk [vmem:[#allocation5 + $0x1] sm:$0x1] %vm678, %v1968
    %v1970 = vld [vmem:[#allocation5] sm:$0x3]
    %v1971 = vld [vmem:[%s6] sm:$0xff]
    %v1973 = vsel %vm682, %v1970, 0
    %1975 = vmatprep.subr.mxu0 0.0
    %v1976 = vand.u32 %v1971, 4294901760
    %1977 = vmatpush1.msra.mxu0 %v1976
    %1978 = vmatprep.subr.mxu0 0.0
    %1979 = vmatpush1.msra.mxu0 0.0
    %1980 = vmatprep.subr.mxu0 0.0
    %1981 = vmatpush1.msra.mxu0 0.0
    %1982 = vmatprep.subr.mxu0 0.0
    %1983 = vmatpush1.msra.mxu0 0.0
    %1984 = vmatprep.subr.mxu0 0.0
    %1985 = vmatpush1.msra.mxu0 0.0
    %1986 = vmatprep.subr.mxu0 0.0
    %1987 = vmatpush1.msra.mxu0 0.0
    %1988 = vmatprep.subr.mxu0 0.0
    %1989 = vmatpush1.msra.mxu0 0.0
    %1990 = vmatprep.subr.mxu0 0.0
    %1991 = vmatpush1.msra.mxu0 0.0
    %1992 = vmatprep.subr.mxu0 0.0
    %1993 = vmatpush1.msra.mxu0 0.0
    %1994 = vmatprep.subr.mxu0 0.0
    %1995 = vmatpush1.msra.mxu0 0.0
    %1996 = vmatprep.subr.mxu0 0.0
    %1997 = vmatpush1.msra.mxu0 0.0
    %1998 = vmatprep.subr.mxu0 0.0
    %1999 = vmatpush1.msra.mxu0 0.0
    %2000 = vmatprep.subr.mxu0 0.0
    %2001 = vmatpush1.msra.mxu0 0.0
    %2002 = vmatprep.subr.mxu0 0.0
    %2003 = vmatpush1.msra.mxu0 0.0
    %2004 = vmatprep.subr.mxu0 0.0
    %2005 = vmatpush1.msra.mxu0 0.0
    %2006 = vmatprep.subr.mxu0 0.0
    %2007 = vmatpush1.msra.mxu0 0.0
    %2008 = vmatprep.subr.mxu0 0.0
    %2009 = vmatpush1.msra.mxu0 0.0
    %2010 = vmatprep.subr.mxu0 0.0
    %2011 = vmatpush1.msra.mxu0 0.0
    %2012 = vmatprep.subr.mxu0 0.0
    %2013 = vmatpush1.msra.mxu0 0.0
    %2014 = vmatprep.subr.mxu0 0.0
    %2015 = vmatpush1.msra.mxu0 0.0
    %2016 = vmatprep.subr.mxu0 0.0
    %2017 = vmatpush1.msra.mxu0 0.0
    %2018 = vmatprep.subr.mxu0 0.0
    %2019 = vmatpush1.msra.mxu0 0.0
    %2020 = vmatprep.subr.mxu0 0.0
    %2021 = vmatpush1.msra.mxu0 0.0
    %2022 = vmatprep.subr.mxu0 0.0
    %2023 = vmatpush1.msra.mxu0 0.0
    %2024 = vmatprep.subr.mxu0 0.0
    %2025 = vmatpush1.msra.mxu0 0.0
    %2026 = vmatprep.subr.mxu0 0.0
    %2027 = vmatpush1.msra.mxu0 0.0
    %2028 = vmatprep.subr.mxu0 0.0
    %2029 = vmatpush1.msra.mxu0 0.0
    %2030 = vmatprep.subr.mxu0 0.0
    %2031 = vmatpush1.msra.mxu0 0.0
    %2032 = vmatprep.subr.mxu0 0.0
    %2033 = vmatpush1.msra.mxu0 0.0
    %2034 = vmatprep.subr.mxu0 0.0
    %2035 = vmatpush1.msra.mxu0 0.0
    %2036 = vmatprep.subr.mxu0 0.0
    %2037 = vmatpush1.msra.mxu0 0.0
    %2038 = vmatprep.subr.mxu0 0.0
    %2039 = vmatpush1.msra.mxu0 0.0
    %2040 = vmatprep.mubr.f32.mxu0 0.0
    %v2041 = vand.u32 %v1973, 4294901760
    %v2042 = vsub.f32 %v1973, %v2041
    %v2043 = vand.u32 %v2042, 4294901760
    %v2044 = vsub.f32 %v2042, %v2043
    %v2045 = vand.u32 %v2044, 4294901760
    %2046 = vmatmul.mubr.f32.gmra.mrb[0].mxu0 %v2045
    %v2047 = vpop.f32.mrb[0].mxu0
    %v2048 = vadd.f32 0.0, %v2047
    %v2049 = vpop.f32.mrb[0].mxu0
    %2050 = vdwg.mxu0
    %2051 = vmatprep.subr.mxu0 0.0
    %v2052 = vand.u32 %v1971, 4294901760
    %v2053 = vsub.f32 %v1971, %v2052
    %v2054 = vand.u32 %v2053, 4294901760
    %v2055 = vsub.f32 %v2053, %v2054
    %v2056 = vand.u32 %v2055, 4294901760
    %2057 = vmatpush1.msra.mxu0 %v2056
    %2058 = vmatprep.subr.mxu0 0.0
    %2059 = vmatpush1.msra.mxu0 0.0
    %2060 = vmatprep.subr.mxu0 0.0
    %2061 = vmatpush1.msra.mxu0 0.0
    %2062 = vmatprep.subr.mxu0 0.0
    %2063 = vmatpush1.msra.mxu0 0.0
    %2064 = vmatprep.subr.mxu0 0.0
    %2065 = vmatpush1.msra.mxu0 0.0
    %2066 = vmatprep.subr.mxu0 0.0
    %2067 = vmatpush1.msra.mxu0 0.0
    %2068 = vmatprep.subr.mxu0 0.0
    %2069 = vmatpush1.msra.mxu0 0.0
    %2070 = vmatprep.subr.mxu0 0.0
    %2071 = vmatpush1.msra.mxu0 0.0
    %2072 = vmatprep.subr.mxu0 0.0
    %2073 = vmatpush1.msra.mxu0 0.0
    %2074 = vmatprep.subr.mxu0 0.0
    %2075 = vmatpush1.msra.mxu0 0.0
    %2076 = vmatprep.subr.mxu0 0.0
    %2077 = vmatpush1.msra.mxu0 0.0
    %2078 = vmatprep.subr.mxu0 0.0
    %2079 = vmatpush1.msra.mxu0 0.0
    %2080 = vmatprep.subr.mxu0 0.0
    %2081 = vmatpush1.msra.mxu0 0.0
    %2082 = vmatprep.subr.mxu0 0.0
    %2083 = vmatpush1.msra.mxu0 0.0
    %2084 = vmatprep.subr.mxu0 0.0
    %2085 = vmatpush1.msra.mxu0 0.0
    %2086 = vmatprep.subr.mxu0 0.0
    %2087 = vmatpush1.msra.mxu0 0.0
    %2088 = vmatprep.subr.mxu0 0.0
    %2089 = vmatpush1.msra.mxu0 0.0
    %2090 = vmatprep.subr.mxu0 0.0
    %2091 = vmatpush1.msra.mxu0 0.0
    %2092 = vmatprep.subr.mxu0 0.0
    %2093 = vmatpush1.msra.mxu0 0.0
    %2094 = vmatprep.subr.mxu0 0.0
    %2095 = vmatpush1.msra.mxu0 0.0
    %2096 = vmatprep.subr.mxu0 0.0
    %2097 = vmatpush1.msra.mxu0 0.0
    %2098 = vmatprep.subr.mxu0 0.0
    %2099 = vmatpush1.msra.mxu0 0.0
    %2100 = vmatprep.subr.mxu0 0.0
    %2101 = vmatpush1.msra.mxu0 0.0
    %2102 = vmatprep.subr.mxu0 0.0
    %2103 = vmatpush1.msra.mxu0 0.0
    %2104 = vmatprep.subr.mxu0 0.0
    %2105 = vmatpush1.msra.mxu0 0.0
    %2106 = vmatprep.subr.mxu0 0.0
    %2107 = vmatpush1.msra.mxu0 0.0
    %2108 = vmatprep.subr.mxu0 0.0
    %2109 = vmatpush1.msra.mxu0 0.0
    %2110 = vmatprep.subr.mxu0 0.0
    %2111 = vmatpush1.msra.mxu0 0.0
    %2112 = vmatprep.subr.mxu0 0.0
    %2113 = vmatpush1.msra.mxu0 0.0
    %2114 = vmatprep.subr.mxu0 0.0
    %2115 = vmatpush1.msra.mxu0 0.0
    %2116 = vmatprep.subr.mxu0 0.0
    %2117 = vmatpush1.msra.mxu0 0.0
    %2118 = vmatprep.subr.mxu0 0.0
    %2119 = vmatpush1.msra.mxu0 0.0
    %2120 = vmatprep.mubr.f32.mxu0 0.0
    %v2121 = vand.u32 %v1973, 4294901760
    %2122 = vmatmul.mubr.f32.gmra.mrb[0].mxu0 %v2121
    %v2123 = vpop.f32.mrb[0].mxu0
    %v2124 = vadd.f32 %v2048, %v2123
    %v2125 = vpop.f32.mrb[0].mxu0
    %2126 = vdwg.mxu0
    %2127 = vmatprep.subr.mxu0 0.0
    %v2128 = vand.u32 %v1971, 4294901760
    %v2129 = vsub.f32 %v1971, %v2128
    %2130 = vmatpush1.msra.mxu0 %v2129
    %2131 = vmatprep.subr.mxu0 0.0
    %2132 = vmatpush1.msra.mxu0 0.0
    %2133 = vmatprep.subr.mxu0 0.0
    %2134 = vmatpush1.msra.mxu0 0.0
    %2135 = vmatprep.subr.mxu0 0.0
    %2136 = vmatpush1.msra.mxu0 0.0
    %2137 = vmatprep.subr.mxu0 0.0
    %2138 = vmatpush1.msra.mxu0 0.0
    %2139 = vmatprep.subr.mxu0 0.0
    %2140 = vmatpush1.msra.mxu0 0.0
    %2141 = vmatprep.subr.mxu0 0.0
    %2142 = vmatpush1.msra.mxu0 0.0
    %2143 = vmatprep.subr.mxu0 0.0
    %2144 = vmatpush1.msra.mxu0 0.0
    %2145 = vmatprep.subr.mxu0 0.0
    %2146 = vmatpush1.msra.mxu0 0.0
    %2147 = vmatprep.subr.mxu0 0.0
    %2148 = vmatpush1.msra.mxu0 0.0
    %2149 = vmatprep.subr.mxu0 0.0
    %2150 = vmatpush1.msra.mxu0 0.0
    %2151 = vmatprep.subr.mxu0 0.0
    %2152 = vmatpush1.msra.mxu0 0.0
    %2153 = vmatprep.subr.mxu0 0.0
    %2154 = vmatpush1.msra.mxu0 0.0
    %2155 = vmatprep.subr.mxu0 0.0
    %2156 = vmatpush1.msra.mxu0 0.0
    %2157 = vmatprep.subr.mxu0 0.0
    %2158 = vmatpush1.msra.mxu0 0.0
    %2159 = vmatprep.subr.mxu0 0.0
    %2160 = vmatpush1.msra.mxu0 0.0
    %2161 = vmatprep.subr.mxu0 0.0
    %2162 = vmatpush1.msra.mxu0 0.0
    %2163 = vmatprep.subr.mxu0 0.0
    %2164 = vmatpush1.msra.mxu0 0.0
    %2165 = vmatprep.subr.mxu0 0.0
    %2166 = vmatpush1.msra.mxu0 0.0
    %2167 = vmatprep.subr.mxu0 0.0
    %2168 = vmatpush1.msra.mxu0 0.0
    %2169 = vmatprep.subr.mxu0 0.0
    %2170 = vmatpush1.msra.mxu0 0.0
    %2171 = vmatprep.subr.mxu0 0.0
    %2172 = vmatpush1.msra.mxu0 0.0
    %2173 = vmatprep.subr.mxu0 0.0
    %2174 = vmatpush1.msra.mxu0 0.0
    %2175 = vmatprep.subr.mxu0 0.0
    %2176 = vmatpush1.msra.mxu0 0.0
    %2177 = vmatprep.subr.mxu0 0.0
    %2178 = vmatpush1.msra.mxu0 0.0
    %2179 = vmatprep.subr.mxu0 0.0
    %2180 = vmatpush1.msra.mxu0 0.0
    %2181 = vmatprep.subr.mxu0 0.0
    %2182 = vmatpush1.msra.mxu0 0.0
    %2183 = vmatprep.subr.mxu0 0.0
    %2184 = vmatpush1.msra.mxu0 0.0
    %2185 = vmatprep.subr.mxu0 0.0
    %2186 = vmatpush1.msra.mxu0 0.0
    %2187 = vmatprep.subr.mxu0 0.0
    %2188 = vmatpush1.msra.mxu0 0.0
    %2189 = vmatprep.subr.mxu0 0.0
    %2190 = vmatpush1.msra.mxu0 0.0
    %2191 = vmatprep.subr.mxu0 0.0
    %2192 = vmatpush1.msra.mxu0 0.0
    %2193 = vmatprep.mubr.f32.mxu0 0.0
    %v2194 = vand.u32 %v1973, 4294901760
    %v2195 = vsub.f32 %v1973, %v2194
    %2196 = vmatmul.mubr.f32.gmra.mrb[0].mxu0 %v2195
    %v2197 = vpop.f32.mrb[0].mxu0
    %v2198 = vadd.f32 %v2124, %v2197
    %v2199 = vpop.f32.mrb[0].mxu0
    %2200 = vdwg.mxu0
    %2201 = vmatprep.subr.mxu0 0.0
    %v2202 = vand.u32 %v1971, 4294901760
    %2203 = vmatpush1.msra.mxu0 %v2202
    %2204 = vmatprep.subr.mxu0 0.0
    %2205 = vmatpush1.msra.mxu0 0.0
    %2206 = vmatprep.subr.mxu0 0.0
    %2207 = vmatpush1.msra.mxu0 0.0
    %2208 = vmatprep.subr.mxu0 0.0
    %2209 = vmatpush1.msra.mxu0 0.0
    %2210 = vmatprep.subr.mxu0 0.0
    %2211 = vmatpush1.msra.mxu0 0.0
    %2212 = vmatprep.subr.mxu0 0.0
    %2213 = vmatpush1.msra.mxu0 0.0
    %2214 = vmatprep.subr.mxu0 0.0
    %2215 = vmatpush1.msra.mxu0 0.0
    %2216 = vmatprep.subr.mxu0 0.0
    %2217 = vmatpush1.msra.mxu0 0.0
    %2218 = vmatprep.subr.mxu0 0.0
    %2219 = vmatpush1.msra.mxu0 0.0
    %2220 = vmatprep.subr.mxu0 0.0
    %2221 = vmatpush1.msra.mxu0 0.0
    %2222 = vmatprep.subr.mxu0 0.0
    %2223 = vmatpush1.msra.mxu0 0.0
    %2224 = vmatprep.subr.mxu0 0.0
    %2225 = vmatpush1.msra.mxu0 0.0
    %2226 = vmatprep.subr.mxu0 0.0
    %2227 = vmatpush1.msra.mxu0 0.0
    %2228 = vmatprep.subr.mxu0 0.0
    %2229 = vmatpush1.msra.mxu0 0.0
    %2230 = vmatprep.subr.mxu0 0.0
    %2231 = vmatpush1.msra.mxu0 0.0
    %2232 = vmatprep.subr.mxu0 0.0
    %2233 = vmatpush1.msra.mxu0 0.0
    %2234 = vmatprep.subr.mxu0 0.0
    %2235 = vmatpush1.msra.mxu0 0.0
    %2236 = vmatprep.subr.mxu0 0.0
    %2237 = vmatpush1.msra.mxu0 0.0
    %2238 = vmatprep.subr.mxu0 0.0
    %2239 = vmatpush1.msra.mxu0 0.0
    %2240 = vmatprep.subr.mxu0 0.0
    %2241 = vmatpush1.msra.mxu0 0.0
    %2242 = vmatprep.subr.mxu0 0.0
    %2243 = vmatpush1.msra.mxu0 0.0
    %2244 = vmatprep.subr.mxu0 0.0
    %2245 = vmatpush1.msra.mxu0 0.0
    %2246 = vmatprep.subr.mxu0 0.0
    %2247 = vmatpush1.msra.mxu0 0.0
    %2248 = vmatprep.subr.mxu0 0.0
    %2249 = vmatpush1.msra.mxu0 0.0
    %2250 = vmatprep.subr.mxu0 0.0
    %2251 = vmatpush1.msra.mxu0 0.0
    %2252 = vmatprep.subr.mxu0 0.0
    %2253 = vmatpush1.msra.mxu0 0.0
    %2254 = vmatprep.subr.mxu0 0.0
    %2255 = vmatpush1.msra.mxu0 0.0
    %2256 = vmatprep.subr.mxu0 0.0
    %2257 = vmatpush1.msra.mxu0 0.0
    %2258 = vmatprep.subr.mxu0 0.0
    %2259 = vmatpush1.msra.mxu0 0.0
    %2260 = vmatprep.subr.mxu0 0.0
    %2261 = vmatpush1.msra.mxu0 0.0
    %2262 = vmatprep.subr.mxu0 0.0
    %2263 = vmatpush1.msra.mxu0 0.0
    %2264 = vmatprep.subr.mxu0 0.0
    %2265 = vmatpush1.msra.mxu0 0.0
    %2266 = vmatprep.mubr.f32.mxu0 0.0
    %v2267 = vand.u32 %v1973, 4294901760
    %v2268 = vsub.f32 %v1973, %v2267
    %v2269 = vand.u32 %v2268, 4294901760
    %2270 = vmatmul.mubr.f32.gmra.mrb[0].mxu0 %v2269
    %v2271 = vpop.f32.mrb[0].mxu0
    %v2272 = vadd.f32 %v2198, %v2271
    %v2273 = vpop.f32.mrb[0].mxu0
    %2274 = vdwg.mxu0
    %2275 = vmatprep.subr.mxu0 0.0
    %v2276 = vand.u32 %v1971, 4294901760
    %v2277 = vsub.f32 %v1971, %v2276
    %v2278 = vand.u32 %v2277, 4294901760
    %2279 = vmatpush1.msra.mxu0 %v2278
    %2280 = vmatprep.subr.mxu0 0.0
    %2281 = vmatpush1.msra.mxu0 0.0
    %2282 = vmatprep.subr.mxu0 0.0
    %2283 = vmatpush1.msra.mxu0 0.0
    %2284 = vmatprep.subr.mxu0 0.0
    %2285 = vmatpush1.msra.mxu0 0.0
    %2286 = vmatprep.subr.mxu0 0.0
    %2287 = vmatpush1.msra.mxu0 0.0
    %2288 = vmatprep.subr.mxu0 0.0
    %2289 = vmatpush1.msra.mxu0 0.0
    %2290 = vmatprep.subr.mxu0 0.0
    %2291 = vmatpush1.msra.mxu0 0.0
    %2292 = vmatprep.subr.mxu0 0.0
    %2293 = vmatpush1.msra.mxu0 0.0
    %2294 = vmatprep.subr.mxu0 0.0
    %2295 = vmatpush1.msra.mxu0 0.0
    %2296 = vmatprep.subr.mxu0 0.0
    %2297 = vmatpush1.msra.mxu0 0.0
    %2298 = vmatprep.subr.mxu0 0.0
    %2299 = vmatpush1.msra.mxu0 0.0
    %2300 = vmatprep.subr.mxu0 0.0
    %2301 = vmatpush1.msra.mxu0 0.0
    %2302 = vmatprep.subr.mxu0 0.0
    %2303 = vmatpush1.msra.mxu0 0.0
    %2304 = vmatprep.subr.mxu0 0.0
    %2305 = vmatpush1.msra.mxu0 0.0
    %2306 = vmatprep.subr.mxu0 0.0
    %2307 = vmatpush1.msra.mxu0 0.0
    %2308 = vmatprep.subr.mxu0 0.0
    %2309 = vmatpush1.msra.mxu0 0.0
    %2310 = vmatprep.subr.mxu0 0.0
    %2311 = vmatpush1.msra.mxu0 0.0
    %2312 = vmatprep.subr.mxu0 0.0
    %2313 = vmatpush1.msra.mxu0 0.0
    %2314 = vmatprep.subr.mxu0 0.0
    %2315 = vmatpush1.msra.mxu0 0.0
    %2316 = vmatprep.subr.mxu0 0.0
    %2317 = vmatpush1.msra.mxu0 0.0
    %2318 = vmatprep.subr.mxu0 0.0
    %2319 = vmatpush1.msra.mxu0 0.0
    %2320 = vmatprep.subr.mxu0 0.0
    %2321 = vmatpush1.msra.mxu0 0.0
    %2322 = vmatprep.subr.mxu0 0.0
    %2323 = vmatpush1.msra.mxu0 0.0
    %2324 = vmatprep.subr.mxu0 0.0
    %2325 = vmatpush1.msra.mxu0 0.0
    %2326 = vmatprep.subr.mxu0 0.0
    %2327 = vmatpush1.msra.mxu0 0.0
    %2328 = vmatprep.subr.mxu0 0.0
    %2329 = vmatpush1.msra.mxu0 0.0
    %2330 = vmatprep.subr.mxu0 0.0
    %2331 = vmatpush1.msra.mxu0 0.0
    %2332 = vmatprep.subr.mxu0 0.0
    %2333 = vmatpush1.msra.mxu0 0.0
    %2334 = vmatprep.subr.mxu0 0.0
    %2335 = vmatpush1.msra.mxu0 0.0
    %2336 = vmatprep.subr.mxu0 0.0
    %2337 = vmatpush1.msra.mxu0 0.0
    %2338 = vmatprep.subr.mxu0 0.0
    %2339 = vmatpush1.msra.mxu0 0.0
    %2340 = vmatprep.subr.mxu0 0.0
    %2341 = vmatpush1.msra.mxu0 0.0
    %2342 = vmatprep.mubr.f32.mxu0 0.0
    %v2343 = vand.u32 %v1973, 4294901760
    %2344 = vmatmul.mubr.f32.gmra.mrb[0].mxu0 %v2343
    %v2345 = vpop.f32.mrb[0].mxu0
    %v2346 = vadd.f32 %v2272, %v2345
    %v2347 = vpop.f32.mrb[0].mxu0
    %2348 = vdwg.mxu0
    %2349 = vmatprep.subr.mxu0 0.0
    %v2350 = vand.u32 %v1971, 4294901760
    %2351 = vmatpush1.msra.mxu0 %v2350
    %2352 = vmatprep.subr.mxu0 0.0
    %2353 = vmatpush1.msra.mxu0 0.0
    %2354 = vmatprep.subr.mxu0 0.0
    %2355 = vmatpush1.msra.mxu0 0.0
    %2356 = vmatprep.subr.mxu0 0.0
    %2357 = vmatpush1.msra.mxu0 0.0
    %2358 = vmatprep.subr.mxu0 0.0
    %2359 = vmatpush1.msra.mxu0 0.0
    %2360 = vmatprep.subr.mxu0 0.0
    %2361 = vmatpush1.msra.mxu0 0.0
    %2362 = vmatprep.subr.mxu0 0.0
    %2363 = vmatpush1.msra.mxu0 0.0
    %2364 = vmatprep.subr.mxu0 0.0
    %2365 = vmatpush1.msra.mxu0 0.0
    %2366 = vmatprep.subr.mxu0 0.0
    %2367 = vmatpush1.msra.mxu0 0.0
    %2368 = vmatprep.subr.mxu0 0.0
    %2369 = vmatpush1.msra.mxu0 0.0
    %2370 = vmatprep.subr.mxu0 0.0
    %2371 = vmatpush1.msra.mxu0 0.0
    %2372 = vmatprep.subr.mxu0 0.0
    %2373 = vmatpush1.msra.mxu0 0.0
    %2374 = vmatprep.subr.mxu0 0.0
    %2375 = vmatpush1.msra.mxu0 0.0
    %2376 = vmatprep.subr.mxu0 0.0
    %2377 = vmatpush1.msra.mxu0 0.0
    %2378 = vmatprep.subr.mxu0 0.0
    %2379 = vmatpush1.msra.mxu0 0.0
    %2380 = vmatprep.subr.mxu0 0.0
    %2381 = vmatpush1.msra.mxu0 0.0
    %2382 = vmatprep.subr.mxu0 0.0
    %2383 = vmatpush1.msra.mxu0 0.0
    %2384 = vmatprep.subr.mxu0 0.0
    %2385 = vmatpush1.msra.mxu0 0.0
    %2386 = vmatprep.subr.mxu0 0.0
    %2387 = vmatpush1.msra.mxu0 0.0
    %2388 = vmatprep.subr.mxu0 0.0
    %2389 = vmatpush1.msra.mxu0 0.0
    %2390 = vmatprep.subr.mxu0 0.0
    %2391 = vmatpush1.msra.mxu0 0.0
    %2392 = vmatprep.subr.mxu0 0.0
    %2393 = vmatpush1.msra.mxu0 0.0
    %2394 = vmatprep.subr.mxu0 0.0
    %2395 = vmatpush1.msra.mxu0 0.0
    %2396 = vmatprep.subr.mxu0 0.0
    %2397 = vmatpush1.msra.mxu0 0.0
    %2398 = vmatprep.subr.mxu0 0.0
    %2399 = vmatpush1.msra.mxu0 0.0
    %2400 = vmatprep.subr.mxu0 0.0
    %2401 = vmatpush1.msra.mxu0 0.0
    %2402 = vmatprep.subr.mxu0 0.0
    %2403 = vmatpush1.msra.mxu0 0.0
    %2404 = vmatprep.subr.mxu0 0.0
    %2405 = vmatpush1.msra.mxu0 0.0
    %2406 = vmatprep.subr.mxu0 0.0
    %2407 = vmatpush1.msra.mxu0 0.0
    %2408 = vmatprep.subr.mxu0 0.0
    %2409 = vmatpush1.msra.mxu0 0.0
    %2410 = vmatprep.subr.mxu0 0.0
    %2411 = vmatpush1.msra.mxu0 0.0
    %2412 = vmatprep.subr.mxu0 0.0
    %2413 = vmatpush1.msra.mxu0 0.0
    %2414 = vmatprep.mubr.f32.mxu0 0.0
    %v2415 = vand.u32 %v1973, 4294901760
    %2416 = vmatmul.mubr.f32.gmra.mrb[0].mxu0 %v2415
    %v2417 = vpop.f32.mrb[0].mxu0
    %v2418 = vadd.f32 %v2346, %v2417
    %v2419 = vpop.f32.mrb[0].mxu0
    %2420 = vdwg.mxu0
    %v2421 = vlaneseq
    %v2422 = vshrl.u32 %v2421, 7
    %v2423 = vsub.s32 0, %v2422
    %v2424 = vrot.slane %v2418, %v2423
    %v2425 = vmul.f32 %v1459, %v2424
    %v2426 = vmul.f32 %v1464, %v2424
    %v2427 = vmul.f32 %v1469, %v2424
    %v2428 = vmul.f32 %v1474, %v2424
    %v2429 = vlaneseq
    %v2430 = vshrl.u32 %v2429, 7
    %v2431 = vsub.s32 1, %v2430
    %v2432 = vrot.slane %v2418, %v2431
    %v2433 = vadd.f32 %v2425, %v2432
    %v2434 = vadd.f32 %v2426, %v2432
    %v2435 = vadd.f32 %v2427, %v2432
    %v2436 = vadd.f32 %v2428, %v2432
    %v2437 = vmul.f32 %v2433, 0.01
    %v2438 = vmul.f32 %v2434, 0.01
    %v2439 = vmul.f32 %v2435, 0.01
    %v2440 = vmul.f32 %v2436, 0.01
    %v2441 = vmax.f32 %v2433, %v2437
    %v2442 = vmax.f32 %v2434, %v2438
    %v2443 = vmax.f32 %v2435, %v2439
    %v2444 = vmax.f32 %v2436, %v2440
    %v2445 = vld [vmem:[#allocation6] sm:$0xff]
    %v2446 = vld [vmem:[#allocation6 + $0x8] sm:$0xff]
    %v2447 = vld [vmem:[#allocation6 + $0x10] sm:$0xff]
    %v2448 = vld [vmem:[#allocation6 + $0x18] sm:$0xff]
    %v2449 = vadd.f32 %v2441, %v2445
    %v2450 = vadd.f32 %v2442, %v2446
    %v2451 = vadd.f32 %v2443, %v2447
    %v2452 = vadd.f32 %v2444, %v2448
    %2453 = vst [vmem:[#allocation14] sm:$0xff] %v2449
    %2454 = vst [vmem:[#allocation14 + $0x8] sm:$0xff] %v2450
    %2455 = vst [vmem:[#allocation14 + $0x10] sm:$0xff] %v2451
    %2456 = vst [vmem:[#allocation14 + $0x18] sm:$0xff] %v2452
    // Predicated region
    $region46: #{tpu_custom_call.1} parent=1 // pred_check
      _
    $region47: #{tpu_custom_call.1} parent=1 // pred_check_branch
      %2458 = sbr.rel (0) target = $region49
    $region48: #{tpu_custom_call.1} parent=1 // pred_region
      %s2460 = ssub.s32 512, 512
      %2461 = vsyncadd [#allocation8], %s2460
      %s2462 = sshll.u32 [#allocation14], 4
      %s2463 = int_to_ptr.vmem [resolvable:$true] %s2462
      %2468 = dma.vmem_to_hbm [thread:$0]  %s2463, 512, %s7, [#allocation8], 128, 128, 8
    $region49: #{tpu_custom_call.1} parent=1 // pred_fallthru
      _
    // Predicated region
    $region50: #{tpu_custom_call.1} parent=1 // pred_check
      _
    $region51: #{tpu_custom_call.1} parent=1 // pred_check_branch
      %2470 = sbr.rel (0) target = $region53
    $region52: #{tpu_custom_call.1} parent=1 // pred_region
      %2471 = dma.done [#allocation8], 512
    $region53: #{tpu_custom_call.1} parent=1 // pred_fallthru
      _
    %2472 = vsyncpa [#allocation7], 1
    %2473 = vsyncpa [#allocation10], 1
    %2474 = vsyncpa [#allocation13], 1
    %2475 = vsyncpa [#allocation8], 1

</llo_original>
